<compile_context>
chip_gen: v5e
topology: v5e:2x2
jax: 0.10.0
libtpu: 0.0.40
codegen_flags: <defaults>
</compile_context>

<pallas_src>
import jax
import jax.numpy as jnp
import numpy as np
from jax.experimental import pallas as pl
from jax.experimental.pallas import tpu as pltpu


def _make_lstm_kernel(depth, T, Bp, H, compute_dtype):
    """Build the Pallas kernel body for a `depth`-layer LSTM (wavefront schedule)."""
    f32 = jnp.float32

    def cell(pre, c_prev):
        # pre columns ordered [i | f | o | g]; the i/f/o columns were pre-scaled
        # by 0.5 wrapper-side, so sigmoid(z) = 0.5*tanh(z/2) + 0.5 and tanh(g)
        # come out of ONE full-width tanh (single EUP pass on all 4H lanes).
        t_all = jnp.tanh(pre)                        # (Bp, 4H)
        ifo = 0.5 * t_all[:, :3 * H] + 0.5           # sigmoid(i), sigmoid(f), sigmoid(o)
        g = t_all[:, 3 * H:]                         # tanh(g)
        i_g = ifo[:, 0 * H:1 * H]
        f_g = ifo[:, 1 * H:2 * H]
        o_g = ifo[:, 2 * H:3 * H]
        c_new = f_g * c_prev + i_g * g
        h_new = o_g * jnp.tanh(c_new)
        return h_new, c_new

    def kernel(*refs):
        # refs = [x2d, h0, c0,
        #         wi0, wh0, b0, (wcat_l, b_l) for l in 1..depth-1,
        #         out2d, h_n, c_n]
        x2d_ref, h0_ref, c0_ref = refs[0], refs[1], refs[2]
        n_w = 3 + 2 * (depth - 1)
        w_refs = refs[3:3 + n_w]
        out_ref = refs[3 + n_w + 0]     # (T*Bp, H)
        hn_ref = refs[3 + n_w + 1]      # (depth, Bp, H)
        cn_ref = refs[3 + n_w + 2]      # (depth, Bp, H)

        # ---- load weights once; hoist bias broadcasts out of the loops ----
        wi0 = w_refs[0][...]            # (D_in, 4H)  compute dtype
        wh0 = w_refs[1][...]            # (H, 4H)     compute dtype
        b0 = w_refs[2][...]             # (1, 4H)     f32
        wcat = [None] * depth
        bfull = [None] * depth
        for l in range(1, depth):
            wcat[l] = w_refs[3 + 2 * (l - 1)][...]                         # (2H, 4H)
            bfull[l] = jnp.broadcast_to(w_refs[4 + 2 * (l - 1)][...], (Bp, 4 * H))

        # ---- hoisted layer-0 input projection: one (T*Bp, D)@(D, 4H) matmul ----
        xproj0 = jnp.dot(x2d_ref[...].astype(compute_dtype), wi0,
                         preferred_element_type=f32) + b0                 # (T*Bp, 4H) f32

        h = [h0_ref[l] for l in range(depth)]        # (Bp, H) f32 per layer
        c = [c0_ref[l] for l in range(depth)]
        y = [None] * depth                           # most recent output of layer l

        # ---- layer/time wavefront, fully unrolled (static T, depth) ----
        # Layer l at step t depends only on layer l-1 at step t, so the per-layer
        # serial chains overlap; the LLO scheduler interleaves them freely.
        # TODO(synk): if the bundle dump shows the loop-invariant RHS (wh0 /
        # wcat[l]) re-pushed to the MXU every step, switch to explicit
        # pltpu.matmul_push_rhs / matmul_acc_lhs / matmul_pop to keep it resident.
        for d in range(T + depth - 1):
            for l in reversed(range(depth)):         # consumers before producers
                t = d - l
                if t < 0 or t >= T:
                    continue
                if l == 0:
                    pre = xproj0[t * Bp:(t + 1) * Bp, :] + jnp.dot(
                        h[0].astype(compute_dtype), wh0,
                        preferred_element_type=f32)                       # (Bp, 4H)
                else:
                    inp = jnp.concatenate([y[l - 1], h[l]], axis=-1)      # (Bp, 2H) f32
                    pre = jnp.dot(inp.astype(compute_dtype), wcat[l],
                                  preferred_element_type=f32) + bfull[l]  # (Bp, 4H)
                h_new, c_new = cell(pre, c[l])
                h[l], c[l], y[l] = h_new, c_new, h_new
                if l == depth - 1:
                    # Sublane-aligned (Bp=8 rows) store; static offset.
                    out_ref[pl.ds(t * Bp, Bp), :] = h_new.astype(out_ref.dtype)

        for l in range(depth):
            hn_ref[l] = h[l].astype(hn_ref.dtype)
            cn_ref[l] = c[l].astype(cn_ref.dtype)

    return kernel


def _pack_params(params, compute_dtype):
    """Reorder gates PyTorch (i,f,g,o) -> (i,f,o,g), fuse along the lane axis,
    fold the 0.5 tanh-sigmoid prescale into the i/f/o columns, and concatenate
    [w_ih; w_hh] along K for layers > 0 (per-step fused [x;h] matmul)."""
    perm = (0, 1, 3, 2)                 # i, f, o, g
    scale = (0.5, 0.5, 0.5, 1.0)        # sigmoid gates get the half-scale; g unscaled
    packed = []
    for l, (wi, wh, b) in enumerate(params):
        wi_cat = jnp.concatenate([wi[k] * s for k, s in zip(perm, scale)], axis=-1)
        wh_cat = jnp.concatenate([wh[k] * s for k, s in zip(perm, scale)], axis=-1)
        b_cat = jnp.concatenate([b[k] * s for k, s in zip(perm, scale)], axis=-1)
        if l == 0:
            packed += [wi_cat.astype(compute_dtype), wh_cat.astype(compute_dtype),
                       b_cat.astype(jnp.float32)]
        else:
            w_fused = jnp.concatenate([wi_cat, wh_cat], axis=0).astype(compute_dtype)
            packed += [w_fused, b_cat.astype(jnp.float32)]
    return packed


def lstm_pallas(x, h0, c0, params, *, compute_dtype=jnp.bfloat16):
    """Multi-layer LSTM forward. params: list of (w_ih (4,D,H), w_hh (4,H,H), b (4,1,H)).

    Returns (out, (h_n, c_n)) matching torch.nn.LSTM forward semantics.
    compute_dtype: MXU operand dtype (bf16 fast path by default); accumulation,
    gate math and h/c state stay f32.
    """
    depth = len(params)
    T, B, D_in = x.shape
    H = h0.shape[-1]
    Bp = 8 * pl.cdiv(B, 8)              # pad batch to a full sublane tile

    if Bp != B:
        pad = ((0, 0), (0, Bp - B), (0, 0))
        x_p = jnp.pad(x, pad)
        h0_p = jnp.pad(h0, pad)
        c0_p = jnp.pad(c0, pad)
    else:
        x_p, h0_p, c0_p = x, h0, c0

    # Flatten (T, Bp, D) -> (T*Bp, D) wrapper-side; every per-step row block is
    # then an (8, .) tile at a static, 8-aligned offset.
    x2d = x_p.reshape(T * Bp, D_in)
    flat_w = _pack_params(params, compute_dtype)
    n_in = 3 + len(flat_w)

    out_shapes = (
        jax.ShapeDtypeStruct((T * Bp, H), x.dtype),
        jax.ShapeDtypeStruct((depth, Bp, H), x.dtype),
        jax.ShapeDtypeStruct((depth, Bp, H), x.dtype),
    )

    out2d, hn_p, cn_p = pl.pallas_call(
        _make_lstm_kernel(depth, T, Bp, H, compute_dtype),
        out_shape=out_shapes,
        in_specs=[pl.BlockSpec(memory_space=pltpu.MemorySpace.VMEM)] * n_in,
        out_specs=tuple(pl.BlockSpec(memory_space=pltpu.MemorySpace.VMEM)
                        for _ in range(3)),
    )(x2d, h0_p, c0_p, *flat_w)

    out = out2d.reshape(T, Bp, H)[:, :B, :]
    return out, (hn_p[:, :B, :], cn_p[:, :B, :])


def lstm_reference(x, h0, c0, params):
    """Pure-JAX reference (unfused weights, PyTorch gate order i,f,g,o)."""
    layer_in = x
    hs, cs = [], []
    for l, (wi, wh, b) in enumerate(params):
        h, c = h0[l], c0[l]
        outs = []
        for t in range(x.shape[0]):
            xt = layer_in[t]
            i_g = jax.nn.sigmoid(xt @ wi[0] + h @ wh[0] + b[0])
            f_g = jax.nn.sigmoid(xt @ wi[1] + h @ wh[1] + b[1])
            g_g = jnp.tanh(xt @ wi[2] + h @ wh[2] + b[2])
            o_g = jax.nn.sigmoid(xt @ wi[3] + h @ wh[3] + b[3])
            c = f_g * c + i_g * g_g
            h = o_g * jnp.tanh(c)
            outs.append(h)
        layer_in = jnp.stack(outs)
        hs.append(h)
        cs.append(c)
    return layer_in, jnp.stack(hs), jnp.stack(cs)


def init_lstm_params(key, in_dim, hidden, depth):
    """Deterministic init mimicking torch.nn.LSTM: U(-1/sqrt(H), 1/sqrt(H))."""
    k = 1.0 / np.sqrt(hidden)
    params = []
    for l in range(depth):
        d_l = in_dim if l == 0 else hidden
        key, k1, k2, k3, k4 = jax.random.split(key, 5)
        w_ih = jax.random.uniform(k1, (4, d_l, hidden), jnp.float32, -k, k)
        w_hh = jax.random.uniform(k2, (4, hidden, hidden), jnp.float32, -k, k)
        b_ih = jax.random.uniform(k3, (4, 1, hidden), jnp.float32, -k, k)
        b_hh = jax.random.uniform(k4, (4, 1, hidden), jnp.float32, -k, k)
        params.append((w_ih, w_hh, b_ih + b_hh))  # PyTorch adds both biases
    return params


if __name__ == "__main__":
    # Small shapes consistent with the module forward (seq, batch, in_dim) + hidden.
    # H=32 → 4H=128 exactly fills the 128-lane vreg / MXU width.
    SEQ, BATCH, IN_DIM, HIDDEN, DEPTH = 8, 2, 16, 32, 2

    root = jax.random.PRNGKey(0)
    kx, kh, kc, kp = jax.random.split(root, 4)
    x = jax.random.normal(kx, (SEQ, BATCH, IN_DIM), jnp.float32)
    h0 = 0.1 * jax.random.normal(kh, (DEPTH, BATCH, HIDDEN), jnp.float32)
    c0 = 0.1 * jax.random.normal(kc, (DEPTH, BATCH, HIDDEN), jnp.float32)
    params = init_lstm_params(kp, IN_DIM, HIDDEN, DEPTH)

    ref_out, ref_h, ref_c = lstm_reference(x, h0, c0, params)

    # 1) f32 MXU operands: tight verification (tanh-form sigmoid is exact math).
    out, (h_n, c_n) = lstm_pallas(x, h0, c0, params, compute_dtype=jnp.float32)
    jax.block_until_ready((out, h_n, c_n))
    np.testing.assert_allclose(np.asarray(out), np.asarray(ref_out), rtol=2e-3, atol=2e-3)
    np.testing.assert_allclose(np.asarray(h_n), np.asarray(ref_h), rtol=2e-3, atol=2e-3)
    np.testing.assert_allclose(np.asarray(c_n), np.asarray(ref_c), rtol=2e-3, atol=2e-3)

    # 2) Default fast path: bf16 MXU operands, f32 accumulation / gate math / state.
    out_bf, (h_bf, c_bf) = lstm_pallas(x, h0, c0, params)
    jax.block_until_ready((out_bf, h_bf, c_bf))
    np.testing.assert_allclose(np.asarray(out_bf), np.asarray(ref_out), rtol=3e-2, atol=3e-2)
    np.testing.assert_allclose(np.asarray(h_bf), np.asarray(ref_h), rtol=3e-2, atol=3e-2)
    np.testing.assert_allclose(np.asarray(c_bf), np.asarray(ref_c), rtol=3e-2, atol=3e-2)

    print("KERNEL_OK")
</pallas_src>

<mosaic_0001>
module attributes {stable_mosaic.version = 11 : i64} {
  func.func @kernel(%arg0: memref<64x16xf32, #tpu.memory_space<vmem>>, %arg1: memref<2x8x32xf32, #tpu.memory_space<vmem>>, %arg2: memref<2x8x32xf32, #tpu.memory_space<vmem>>, %arg3: memref<16x128xf32, #tpu.memory_space<vmem>>, %arg4: memref<32x128xf32, #tpu.memory_space<vmem>>, %arg5: memref<1x128xf32, #tpu.memory_space<vmem>>, %arg6: memref<64x128xf32, #tpu.memory_space<vmem>>, %arg7: memref<1x128xf32, #tpu.memory_space<vmem>>, %arg8: memref<64x32xf32, #tpu.memory_space<vmem>>, %arg9: memref<2x8x32xf32, #tpu.memory_space<vmem>>, %arg10: memref<2x8x32xf32, #tpu.memory_space<vmem>>) attributes {dimension_semantics = [], scalar_prefetch = 0 : i64, scratch_operands = 0 : i64, tpu.core_type = #tpu.core_type<tc>} {
    %c0 = arith.constant 0 : index
    %c0_0 = arith.constant 0 : index
    %0 = vector.load %arg3[%c0, %c0_0] : memref<16x128xf32, #tpu.memory_space<vmem>>, vector<16x128xf32>
    %c0_1 = arith.constant 0 : index
    %c0_2 = arith.constant 0 : index
    %1 = vector.load %arg4[%c0_1, %c0_2] : memref<32x128xf32, #tpu.memory_space<vmem>>, vector<32x128xf32>
    %c0_3 = arith.constant 0 : index
    %c0_4 = arith.constant 0 : index
    %2 = vector.load %arg5[%c0_3, %c0_4] : memref<1x128xf32, #tpu.memory_space<vmem>>, vector<1x128xf32>
    %c0_5 = arith.constant 0 : index
    %c0_6 = arith.constant 0 : index
    %3 = vector.load %arg6[%c0_5, %c0_6] : memref<64x128xf32, #tpu.memory_space<vmem>>, vector<64x128xf32>
    %c0_7 = arith.constant 0 : index
    %c0_8 = arith.constant 0 : index
    %4 = vector.load %arg7[%c0_7, %c0_8] : memref<1x128xf32, #tpu.memory_space<vmem>>, vector<1x128xf32>
    %5 = vector.shape_cast %4 : vector<1x128xf32> to vector<1x128xf32>
    %6 = vector.broadcast %5 : vector<1x128xf32> to vector<8x128xf32>
    %c0_9 = arith.constant 0 : index
    %c0_10 = arith.constant 0 : index
    %7 = vector.load %arg0[%c0_9, %c0_10] : memref<64x16xf32, #tpu.memory_space<vmem>>, vector<64x16xf32>
    %cst = arith.constant dense<0.000000e+00> : vector<64x128xf32>
    %8 = tpu.matmul %7, %0, %cst {dimension_numbers = #tpu.dot_dimension_numbers<[1], [0], [0], [1], [0, 0, 1, 1], [], []>} : vector<64x16xf32>, vector<16x128xf32>, vector<64x128xf32> -> vector<64x128xf32>
    %9 = vector.broadcast %2 : vector<1x128xf32> to vector<64x128xf32>
    %10 = arith.addf %8, %9 : vector<64x128xf32>
    %c0_11 = arith.constant 0 : index
    %c0_12 = arith.constant 0 : index
    %c0_13 = arith.constant 0 : index
    %11 = vector.load %arg1[%c0_11, %c0_12, %c0_13] : memref<2x8x32xf32, #tpu.memory_space<vmem>>, vector<1x8x32xf32>
    %12 = vector.shape_cast %11 : vector<1x8x32xf32> to vector<8x32xf32>
    %c1 = arith.constant 1 : index
    %c0_14 = arith.constant 0 : index
    %c0_15 = arith.constant 0 : index
    %13 = vector.load %arg1[%c1, %c0_14, %c0_15] : memref<2x8x32xf32, #tpu.memory_space<vmem>>, vector<1x8x32xf32>
    %14 = vector.shape_cast %13 : vector<1x8x32xf32> to vector<8x32xf32>
    %c0_16 = arith.constant 0 : index
    %c0_17 = arith.constant 0 : index
    %c0_18 = arith.constant 0 : index
    %15 = vector.load %arg2[%c0_16, %c0_17, %c0_18] : memref<2x8x32xf32, #tpu.memory_space<vmem>>, vector<1x8x32xf32>
    %16 = vector.shape_cast %15 : vector<1x8x32xf32> to vector<8x32xf32>
    %c1_19 = arith.constant 1 : index
    %c0_20 = arith.constant 0 : index
    %c0_21 = arith.constant 0 : index
    %17 = vector.load %arg2[%c1_19, %c0_20, %c0_21] : memref<2x8x32xf32, #tpu.memory_space<vmem>>, vector<1x8x32xf32>
    %18 = vector.shape_cast %17 : vector<1x8x32xf32> to vector<8x32xf32>
    %19 = vector.extract_strided_slice %10 {offsets = [0, 0], sizes = [8, 128], strides = [1, 1]} : vector<64x128xf32> to vector<8x128xf32>
    %cst_22 = arith.constant dense<0.000000e+00> : vector<8x128xf32>
    %20 = tpu.matmul %12, %1, %cst_22 {dimension_numbers = #tpu.dot_dimension_numbers<[1], [0], [0], [1], [0, 0, 1, 1], [], []>} : vector<8x32xf32>, vector<32x128xf32>, vector<8x128xf32> -> vector<8x128xf32>
    %21 = arith.addf %19, %20 : vector<8x128xf32>
    %22 = math.tanh %21 : vector<8x128xf32>
    %23 = vector.extract_strided_slice %22 {offsets = [0, 0], sizes = [8, 96], strides = [1, 1]} : vector<8x128xf32> to vector<8x96xf32>
    %cst_23 = arith.constant 5.000000e-01 : f32
    %24 = vector.broadcast %cst_23 : f32 to vector<8x96xf32>
    %25 = arith.mulf %24, %23 : vector<8x96xf32>
    %cst_24 = arith.constant 5.000000e-01 : f32
    %26 = vector.broadcast %cst_24 : f32 to vector<8x96xf32>
    %27 = arith.addf %25, %26 : vector<8x96xf32>
    %28 = vector.extract_strided_slice %22 {offsets = [0, 96], sizes = [8, 32], strides = [1, 1]} : vector<8x128xf32> to vector<8x32xf32>
    %29 = vector.extract_strided_slice %27 {offsets = [0, 0], sizes = [8, 32], strides = [1, 1]} : vector<8x96xf32> to vector<8x32xf32>
    %30 = vector.extract_strided_slice %27 {offsets = [0, 32], sizes = [8, 32], strides = [1, 1]} : vector<8x96xf32> to vector<8x32xf32>
    %31 = vector.extract_strided_slice %27 {offsets = [0, 64], sizes = [8, 32], strides = [1, 1]} : vector<8x96xf32> to vector<8x32xf32>
    %32 = arith.mulf %30, %16 : vector<8x32xf32>
    %33 = arith.mulf %29, %28 : vector<8x32xf32>
    %34 = arith.addf %32, %33 : vector<8x32xf32>
    %35 = math.tanh %34 : vector<8x32xf32>
    %36 = arith.mulf %31, %35 : vector<8x32xf32>
    %37 = tpu.concatenate %36, %14 in 1 : vector<8x32xf32>, vector<8x32xf32> -> vector<8x64xf32>
    %cst_25 = arith.constant dense<0.000000e+00> : vector<8x128xf32>
    %38 = tpu.matmul %37, %3, %cst_25 {dimension_numbers = #tpu.dot_dimension_numbers<[1], [0], [0], [1], [0, 0, 1, 1], [], []>} : vector<8x64xf32>, vector<64x128xf32>, vector<8x128xf32> -> vector<8x128xf32>
    %39 = arith.addf %38, %6 : vector<8x128xf32>
    %40 = math.tanh %39 : vector<8x128xf32>
    %41 = vector.extract_strided_slice %40 {offsets = [0, 0], sizes = [8, 96], strides = [1, 1]} : vector<8x128xf32> to vector<8x96xf32>
    %cst_26 = arith.constant 5.000000e-01 : f32
    %42 = vector.broadcast %cst_26 : f32 to vector<8x96xf32>
    %43 = arith.mulf %42, %41 : vector<8x96xf32>
    %cst_27 = arith.constant 5.000000e-01 : f32
    %44 = vector.broadcast %cst_27 : f32 to vector<8x96xf32>
    %45 = arith.addf %43, %44 : vector<8x96xf32>
    %46 = vector.extract_strided_slice %40 {offsets = [0, 96], sizes = [8, 32], strides = [1, 1]} : vector<8x128xf32> to vector<8x32xf32>
    %47 = vector.extract_strided_slice %45 {offsets = [0, 0], sizes = [8, 32], strides = [1, 1]} : vector<8x96xf32> to vector<8x32xf32>
    %48 = vector.extract_strided_slice %45 {offsets = [0, 32], sizes = [8, 32], strides = [1, 1]} : vector<8x96xf32> to vector<8x32xf32>
    %49 = vector.extract_strided_slice %45 {offsets = [0, 64], sizes = [8, 32], strides = [1, 1]} : vector<8x96xf32> to vector<8x32xf32>
    %50 = arith.mulf %48, %18 : vector<8x32xf32>
    %51 = arith.mulf %47, %46 : vector<8x32xf32>
    %52 = arith.addf %50, %51 : vector<8x32xf32>
    %53 = math.tanh %52 : vector<8x32xf32>
    %54 = arith.mulf %49, %53 : vector<8x32xf32>
    %c0_28 = arith.constant 0 : index
    %c0_29 = arith.constant 0 : index
    %55 = vector.load %arg8[%c0_28, %c0_29] : memref<64x32xf32, #tpu.memory_space<vmem>>, vector<8x32xf32>
    tpu.vector_store %arg8[%c0_28, %c0_29], %54 {strides = array<i32>} : memref<64x32xf32, #tpu.memory_space<vmem>>, vector<8x32xf32>,
    %56 = vector.extract_strided_slice %10 {offsets = [8, 0], sizes = [8, 128], strides = [1, 1]} : vector<64x128xf32> to vector<8x128xf32>
    %cst_30 = arith.constant dense<0.000000e+00> : vector<8x128xf32>
    %57 = tpu.matmul %36, %1, %cst_30 {dimension_numbers = #tpu.dot_dimension_numbers<[1], [0], [0], [1], [0, 0, 1, 1], [], []>} : vector<8x32xf32>, vector<32x128xf32>, vector<8x128xf32> -> vector<8x128xf32>
    %58 = arith.addf %56, %57 : vector<8x128xf32>
    %59 = math.tanh %58 : vector<8x128xf32>
    %60 = vector.extract_strided_slice %59 {offsets = [0, 0], sizes = [8, 96], strides = [1, 1]} : vector<8x128xf32> to vector<8x96xf32>
    %cst_31 = arith.constant 5.000000e-01 : f32
    %61 = vector.broadcast %cst_31 : f32 to vector<8x96xf32>
    %62 = arith.mulf %61, %60 : vector<8x96xf32>
    %cst_32 = arith.constant 5.000000e-01 : f32
    %63 = vector.broadcast %cst_32 : f32 to vector<8x96xf32>
    %64 = arith.addf %62, %63 : vector<8x96xf32>
    %65 = vector.extract_strided_slice %59 {offsets = [0, 96], sizes = [8, 32], strides = [1, 1]} : vector<8x128xf32> to vector<8x32xf32>
    %66 = vector.extract_strided_slice %64 {offsets = [0, 0], sizes = [8, 32], strides = [1, 1]} : vector<8x96xf32> to vector<8x32xf32>
    %67 = vector.extract_strided_slice %64 {offsets = [0, 32], sizes = [8, 32], strides = [1, 1]} : vector<8x96xf32> to vector<8x32xf32>
    %68 = vector.extract_strided_slice %64 {offsets = [0, 64], sizes = [8, 32], strides = [1, 1]} : vector<8x96xf32> to vector<8x32xf32>
    %69 = arith.mulf %67, %34 : vector<8x32xf32>
    %70 = arith.mulf %66, %65 : vector<8x32xf32>
    %71 = arith.addf %69, %70 : vector<8x32xf32>
    %72 = math.tanh %71 : vector<8x32xf32>
    %73 = arith.mulf %68, %72 : vector<8x32xf32>
    %74 = tpu.concatenate %73, %54 in 1 : vector<8x32xf32>, vector<8x32xf32> -> vector<8x64xf32>
    %cst_33 = arith.constant dense<0.000000e+00> : vector<8x128xf32>
    %75 = tpu.matmul %74, %3, %cst_33 {dimension_numbers = #tpu.dot_dimension_numbers<[1], [0], [0], [1], [0, 0, 1, 1], [], []>} : vector<8x64xf32>, vector<64x128xf32>, vector<8x128xf32> -> vector<8x128xf32>
    %76 = arith.addf %75, %6 : vector<8x128xf32>
    %77 = math.tanh %76 : vector<8x128xf32>
    %78 = vector.extract_strided_slice %77 {offsets = [0, 0], sizes = [8, 96], strides = [1, 1]} : vector<8x128xf32> to vector<8x96xf32>
    %cst_34 = arith.constant 5.000000e-01 : f32
    %79 = vector.broadcast %cst_34 : f32 to vector<8x96xf32>
    %80 = arith.mulf %79, %78 : vector<8x96xf32>
    %cst_35 = arith.constant 5.000000e-01 : f32
    %81 = vector.broadcast %cst_35 : f32 to vector<8x96xf32>
    %82 = arith.addf %80, %81 : vector<8x96xf32>
    %83 = vector.extract_strided_slice %77 {offsets = [0, 96], sizes = [8, 32], strides = [1, 1]} : vector<8x128xf32> to vector<8x32xf32>
    %84 = vector.extract_strided_slice %82 {offsets = [0, 0], sizes = [8, 32], strides = [1, 1]} : vector<8x96xf32> to vector<8x32xf32>
    %85 = vector.extract_strided_slice %82 {offsets = [0, 32], sizes = [8, 32], strides = [1, 1]} : vector<8x96xf32> to vector<8x32xf32>
    %86 = vector.extract_strided_slice %82 {offsets = [0, 64], sizes = [8, 32], strides = [1, 1]} : vector<8x96xf32> to vector<8x32xf32>
    %87 = arith.mulf %85, %52 : vector<8x32xf32>
    %88 = arith.mulf %84, %83 : vector<8x32xf32>
    %89 = arith.addf %87, %88 : vector<8x32xf32>
    %90 = math.tanh %89 : vector<8x32xf32>
    %91 = arith.mulf %86, %90 : vector<8x32xf32>
    %c8 = arith.constant 8 : index
    %c0_36 = arith.constant 0 : index
    %92 = vector.load %arg8[%c8, %c0_36] : memref<64x32xf32, #tpu.memory_space<vmem>>, vector<8x32xf32>
    tpu.vector_store %arg8[%c8, %c0_36], %91 {strides = array<i32>} : memref<64x32xf32, #tpu.memory_space<vmem>>, vector<8x32xf32>,
    %93 = vector.extract_strided_slice %10 {offsets = [16, 0], sizes = [8, 128], strides = [1, 1]} : vector<64x128xf32> to vector<8x128xf32>
    %cst_37 = arith.constant dense<0.000000e+00> : vector<8x128xf32>
    %94 = tpu.matmul %73, %1, %cst_37 {dimension_numbers = #tpu.dot_dimension_numbers<[1], [0], [0], [1], [0, 0, 1, 1], [], []>} : vector<8x32xf32>, vector<32x128xf32>, vector<8x128xf32> -> vector<8x128xf32>
    %95 = arith.addf %93, %94 : vector<8x128xf32>
    %96 = math.tanh %95 : vector<8x128xf32>
    %97 = vector.extract_strided_slice %96 {offsets = [0, 0], sizes = [8, 96], strides = [1, 1]} : vector<8x128xf32> to vector<8x96xf32>
    %cst_38 = arith.constant 5.000000e-01 : f32
    %98 = vector.broadcast %cst_38 : f32 to vector<8x96xf32>
    %99 = arith.mulf %98, %97 : vector<8x96xf32>
    %cst_39 = arith.constant 5.000000e-01 : f32
    %100 = vector.broadcast %cst_39 : f32 to vector<8x96xf32>
    %101 = arith.addf %99, %100 : vector<8x96xf32>
    %102 = vector.extract_strided_slice %96 {offsets = [0, 96], sizes = [8, 32], strides = [1, 1]} : vector<8x128xf32> to vector<8x32xf32>
    %103 = vector.extract_strided_slice %101 {offsets = [0, 0], sizes = [8, 32], strides = [1, 1]} : vector<8x96xf32> to vector<8x32xf32>
    %104 = vector.extract_strided_slice %101 {offsets = [0, 32], sizes = [8, 32], strides = [1, 1]} : vector<8x96xf32> to vector<8x32xf32>
    %105 = vector.extract_strided_slice %101 {offsets = [0, 64], sizes = [8, 32], strides = [1, 1]} : vector<8x96xf32> to vector<8x32xf32>
    %106 = arith.mulf %104, %71 : vector<8x32xf32>
    %107 = arith.mulf %103, %102 : vector<8x32xf32>
    %108 = arith.addf %106, %107 : vector<8x32xf32>
    %109 = math.tanh %108 : vector<8x32xf32>
    %110 = arith.mulf %105, %109 : vector<8x32xf32>
    %111 = tpu.concatenate %110, %91 in 1 : vector<8x32xf32>, vector<8x32xf32> -> vector<8x64xf32>
    %cst_40 = arith.constant dense<0.000000e+00> : vector<8x128xf32>
    %112 = tpu.matmul %111, %3, %cst_40 {dimension_numbers = #tpu.dot_dimension_numbers<[1], [0], [0], [1], [0, 0, 1, 1], [], []>} : vector<8x64xf32>, vector<64x128xf32>, vector<8x128xf32> -> vector<8x128xf32>
    %113 = arith.addf %112, %6 : vector<8x128xf32>
    %114 = math.tanh %113 : vector<8x128xf32>
    %115 = vector.extract_strided_slice %114 {offsets = [0, 0], sizes = [8, 96], strides = [1, 1]} : vector<8x128xf32> to vector<8x96xf32>
    %cst_41 = arith.constant 5.000000e-01 : f32
    %116 = vector.broadcast %cst_41 : f32 to vector<8x96xf32>
    %117 = arith.mulf %116, %115 : vector<8x96xf32>
    %cst_42 = arith.constant 5.000000e-01 : f32
    %118 = vector.broadcast %cst_42 : f32 to vector<8x96xf32>
    %119 = arith.addf %117, %118 : vector<8x96xf32>
    %120 = vector.extract_strided_slice %114 {offsets = [0, 96], sizes = [8, 32], strides = [1, 1]} : vector<8x128xf32> to vector<8x32xf32>
    %121 = vector.extract_strided_slice %119 {offsets = [0, 0], sizes = [8, 32], strides = [1, 1]} : vector<8x96xf32> to vector<8x32xf32>
    %122 = vector.extract_strided_slice %119 {offsets = [0, 32], sizes = [8, 32], strides = [1, 1]} : vector<8x96xf32> to vector<8x32xf32>
    %123 = vector.extract_strided_slice %119 {offsets = [0, 64], sizes = [8, 32], strides = [1, 1]} : vector<8x96xf32> to vector<8x32xf32>
    %124 = arith.mulf %122, %89 : vector<8x32xf32>
    %125 = arith.mulf %121, %120 : vector<8x32xf32>
    %126 = arith.addf %124, %125 : vector<8x32xf32>
    %127 = math.tanh %126 : vector<8x32xf32>
    %128 = arith.mulf %123, %127 : vector<8x32xf32>
    %c16 = arith.constant 16 : index
    %c0_43 = arith.constant 0 : index
    %129 = vector.load %arg8[%c16, %c0_43] : memref<64x32xf32, #tpu.memory_space<vmem>>, vector<8x32xf32>
    tpu.vector_store %arg8[%c16, %c0_43], %128 {strides = array<i32>} : memref<64x32xf32, #tpu.memory_space<vmem>>, vector<8x32xf32>,
    %130 = vector.extract_strided_slice %10 {offsets = [24, 0], sizes = [8, 128], strides = [1, 1]} : vector<64x128xf32> to vector<8x128xf32>
    %cst_44 = arith.constant dense<0.000000e+00> : vector<8x128xf32>
    %131 = tpu.matmul %110, %1, %cst_44 {dimension_numbers = #tpu.dot_dimension_numbers<[1], [0], [0], [1], [0, 0, 1, 1], [], []>} : vector<8x32xf32>, vector<32x128xf32>, vector<8x128xf32> -> vector<8x128xf32>
    %132 = arith.addf %130, %131 : vector<8x128xf32>
    %133 = math.tanh %132 : vector<8x128xf32>
    %134 = vector.extract_strided_slice %133 {offsets = [0, 0], sizes = [8, 96], strides = [1, 1]} : vector<8x128xf32> to vector<8x96xf32>
    %cst_45 = arith.constant 5.000000e-01 : f32
    %135 = vector.broadcast %cst_45 : f32 to vector<8x96xf32>
    %136 = arith.mulf %135, %134 : vector<8x96xf32>
    %cst_46 = arith.constant 5.000000e-01 : f32
    %137 = vector.broadcast %cst_46 : f32 to vector<8x96xf32>
    %138 = arith.addf %136, %137 : vector<8x96xf32>
    %139 = vector.extract_strided_slice %133 {offsets = [0, 96], sizes = [8, 32], strides = [1, 1]} : vector<8x128xf32> to vector<8x32xf32>
    %140 = vector.extract_strided_slice %138 {offsets = [0, 0], sizes = [8, 32], strides = [1, 1]} : vector<8x96xf32> to vector<8x32xf32>
    %141 = vector.extract_strided_slice %138 {offsets = [0, 32], sizes = [8, 32], strides = [1, 1]} : vector<8x96xf32> to vector<8x32xf32>
    %142 = vector.extract_strided_slice %138 {offsets = [0, 64], sizes = [8, 32], strides = [1, 1]} : vector<8x96xf32> to vector<8x32xf32>
    %143 = arith.mulf %141, %108 : vector<8x32xf32>
    %144 = arith.mulf %140, %139 : vector<8x32xf32>
    %145 = arith.addf %143, %144 : vector<8x32xf32>
    %146 = math.tanh %145 : vector<8x32xf32>
    %147 = arith.mulf %142, %146 : vector<8x32xf32>
    %148 = tpu.concatenate %147, %128 in 1 : vector<8x32xf32>, vector<8x32xf32> -> vector<8x64xf32>
    %cst_47 = arith.constant dense<0.000000e+00> : vector<8x128xf32>
    %149 = tpu.matmul %148, %3, %cst_47 {dimension_numbers = #tpu.dot_dimension_numbers<[1], [0], [0], [1], [0, 0, 1, 1], [], []>} : vector<8x64xf32>, vector<64x128xf32>, vector<8x128xf32> -> vector<8x128xf32>
    %150 = arith.addf %149, %6 : vector<8x128xf32>
    %151 = math.tanh %150 : vector<8x128xf32>
    %152 = vector.extract_strided_slice %151 {offsets = [0, 0], sizes = [8, 96], strides = [1, 1]} : vector<8x128xf32> to vector<8x96xf32>
    %cst_48 = arith.constant 5.000000e-01 : f32
    %153 = vector.broadcast %cst_48 : f32 to vector<8x96xf32>
    %154 = arith.mulf %153, %152 : vector<8x96xf32>
    %cst_49 = arith.constant 5.000000e-01 : f32
    %155 = vector.broadcast %cst_49 : f32 to vector<8x96xf32>
    %156 = arith.addf %154, %155 : vector<8x96xf32>
    %157 = vector.extract_strided_slice %151 {offsets = [0, 96], sizes = [8, 32], strides = [1, 1]} : vector<8x128xf32> to vector<8x32xf32>
    %158 = vector.extract_strided_slice %156 {offsets = [0, 0], sizes = [8, 32], strides = [1, 1]} : vector<8x96xf32> to vector<8x32xf32>
    %159 = vector.extract_strided_slice %156 {offsets = [0, 32], sizes = [8, 32], strides = [1, 1]} : vector<8x96xf32> to vector<8x32xf32>
    %160 = vector.extract_strided_slice %156 {offsets = [0, 64], sizes = [8, 32], strides = [1, 1]} : vector<8x96xf32> to vector<8x32xf32>
    %161 = arith.mulf %159, %126 : vector<8x32xf32>
    %162 = arith.mulf %158, %157 : vector<8x32xf32>
    %163 = arith.addf %161, %162 : vector<8x32xf32>
    %164 = math.tanh %163 : vector<8x32xf32>
    %165 = arith.mulf %160, %164 : vector<8x32xf32>
    %c24 = arith.constant 24 : index
    %c0_50 = arith.constant 0 : index
    %166 = vector.load %arg8[%c24, %c0_50] : memref<64x32xf32, #tpu.memory_space<vmem>>, vector<8x32xf32>
    tpu.vector_store %arg8[%c24, %c0_50], %165 {strides = array<i32>} : memref<64x32xf32, #tpu.memory_space<vmem>>, vector<8x32xf32>,
    %167 = vector.extract_strided_slice %10 {offsets = [32, 0], sizes = [8, 128], strides = [1, 1]} : vector<64x128xf32> to vector<8x128xf32>
    %cst_51 = arith.constant dense<0.000000e+00> : vector<8x128xf32>
    %168 = tpu.matmul %147, %1, %cst_51 {dimension_numbers = #tpu.dot_dimension_numbers<[1], [0], [0], [1], [0, 0, 1, 1], [], []>} : vector<8x32xf32>, vector<32x128xf32>, vector<8x128xf32> -> vector<8x128xf32>
    %169 = arith.addf %167, %168 : vector<8x128xf32>
    %170 = math.tanh %169 : vector<8x128xf32>
    %171 = vector.extract_strided_slice %170 {offsets = [0, 0], sizes = [8, 96], strides = [1, 1]} : vector<8x128xf32> to vector<8x96xf32>
    %cst_52 = arith.constant 5.000000e-01 : f32
    %172 = vector.broadcast %cst_52 : f32 to vector<8x96xf32>
    %173 = arith.mulf %172, %171 : vector<8x96xf32>
    %cst_53 = arith.constant 5.000000e-01 : f32
    %174 = vector.broadcast %cst_53 : f32 to vector<8x96xf32>
    %175 = arith.addf %173, %174 : vector<8x96xf32>
    %176 = vector.extract_strided_slice %170 {offsets = [0, 96], sizes = [8, 32], strides = [1, 1]} : vector<8x128xf32> to vector<8x32xf32>
    %177 = vector.extract_strided_slice %175 {offsets = [0, 0], sizes = [8, 32], strides = [1, 1]} : vector<8x96xf32> to vector<8x32xf32>
    %178 = vector.extract_strided_slice %175 {offsets = [0, 32], sizes = [8, 32], strides = [1, 1]} : vector<8x96xf32> to vector<8x32xf32>
    %179 = vector.extract_strided_slice %175 {offsets = [0, 64], sizes = [8, 32], strides = [1, 1]} : vector<8x96xf32> to vector<8x32xf32>
    %180 = arith.mulf %178, %145 : vector<8x32xf32>
    %181 = arith.mulf %177, %176 : vector<8x32xf32>
    %182 = arith.addf %180, %181 : vector<8x32xf32>
    %183 = math.tanh %182 : vector<8x32xf32>
    %184 = arith.mulf %179, %183 : vector<8x32xf32>
    %185 = tpu.concatenate %184, %165 in 1 : vector<8x32xf32>, vector<8x32xf32> -> vector<8x64xf32>
    %cst_54 = arith.constant dense<0.000000e+00> : vector<8x128xf32>
    %186 = tpu.matmul %185, %3, %cst_54 {dimension_numbers = #tpu.dot_dimension_numbers<[1], [0], [0], [1], [0, 0, 1, 1], [], []>} : vector<8x64xf32>, vector<64x128xf32>, vector<8x128xf32> -> vector<8x128xf32>
    %187 = arith.addf %186, %6 : vector<8x128xf32>
    %188 = math.tanh %187 : vector<8x128xf32>
    %189 = vector.extract_strided_slice %188 {offsets = [0, 0], sizes = [8, 96], strides = [1, 1]} : vector<8x128xf32> to vector<8x96xf32>
    %cst_55 = arith.constant 5.000000e-01 : f32
    %190 = vector.broadcast %cst_55 : f32 to vector<8x96xf32>
    %191 = arith.mulf %190, %189 : vector<8x96xf32>
    %cst_56 = arith.constant 5.000000e-01 : f32
    %192 = vector.broadcast %cst_56 : f32 to vector<8x96xf32>
    %193 = arith.addf %191, %192 : vector<8x96xf32>
    %194 = vector.extract_strided_slice %188 {offsets = [0, 96], sizes = [8, 32], strides = [1, 1]} : vector<8x128xf32> to vector<8x32xf32>
    %195 = vector.extract_strided_slice %193 {offsets = [0, 0], sizes = [8, 32], strides = [1, 1]} : vector<8x96xf32> to vector<8x32xf32>
    %196 = vector.extract_strided_slice %193 {offsets = [0, 32], sizes = [8, 32], strides = [1, 1]} : vector<8x96xf32> to vector<8x32xf32>
    %197 = vector.extract_strided_slice %193 {offsets = [0, 64], sizes = [8, 32], strides = [1, 1]} : vector<8x96xf32> to vector<8x32xf32>
    %198 = arith.mulf %196, %163 : vector<8x32xf32>
    %199 = arith.mulf %195, %194 : vector<8x32xf32>
    %200 = arith.addf %198, %199 : vector<8x32xf32>
    %201 = math.tanh %200 : vector<8x32xf32>
    %202 = arith.mulf %197, %201 : vector<8x32xf32>
    %c32 = arith.constant 32 : index
    %c0_57 = arith.constant 0 : index
    %203 = vector.load %arg8[%c32, %c0_57] : memref<64x32xf32, #tpu.memory_space<vmem>>, vector<8x32xf32>
    tpu.vector_store %arg8[%c32, %c0_57], %202 {strides = array<i32>} : memref<64x32xf32, #tpu.memory_space<vmem>>, vector<8x32xf32>,
    %204 = vector.extract_strided_slice %10 {offsets = [40, 0], sizes = [8, 128], strides = [1, 1]} : vector<64x128xf32> to vector<8x128xf32>
    %cst_58 = arith.constant dense<0.000000e+00> : vector<8x128xf32>
    %205 = tpu.matmul %184, %1, %cst_58 {dimension_numbers = #tpu.dot_dimension_numbers<[1], [0], [0], [1], [0, 0, 1, 1], [], []>} : vector<8x32xf32>, vector<32x128xf32>, vector<8x128xf32> -> vector<8x128xf32>
    %206 = arith.addf %204, %205 : vector<8x128xf32>
    %207 = math.tanh %206 : vector<8x128xf32>
    %208 = vector.extract_strided_slice %207 {offsets = [0, 0], sizes = [8, 96], strides = [1, 1]} : vector<8x128xf32> to vector<8x96xf32>
    %cst_59 = arith.constant 5.000000e-01 : f32
    %209 = vector.broadcast %cst_59 : f32 to vector<8x96xf32>
    %210 = arith.mulf %209, %208 : vector<8x96xf32>
    %cst_60 = arith.constant 5.000000e-01 : f32
    %211 = vector.broadcast %cst_60 : f32 to vector<8x96xf32>
    %212 = arith.addf %210, %211 : vector<8x96xf32>
    %213 = vector.extract_strided_slice %207 {offsets = [0, 96], sizes = [8, 32], strides = [1, 1]} : vector<8x128xf32> to vector<8x32xf32>
    %214 = vector.extract_strided_slice %212 {offsets = [0, 0], sizes = [8, 32], strides = [1, 1]} : vector<8x96xf32> to vector<8x32xf32>
    %215 = vector.extract_strided_slice %212 {offsets = [0, 32], sizes = [8, 32], strides = [1, 1]} : vector<8x96xf32> to vector<8x32xf32>
    %216 = vector.extract_strided_slice %212 {offsets = [0, 64], sizes = [8, 32], strides = [1, 1]} : vector<8x96xf32> to vector<8x32xf32>
    %217 = arith.mulf %215, %182 : vector<8x32xf32>
    %218 = arith.mulf %214, %213 : vector<8x32xf32>
    %219 = arith.addf %217, %218 : vector<8x32xf32>
    %220 = math.tanh %219 : vector<8x32xf32>
    %221 = arith.mulf %216, %220 : vector<8x32xf32>
    %222 = tpu.concatenate %221, %202 in 1 : vector<8x32xf32>, vector<8x32xf32> -> vector<8x64xf32>
    %cst_61 = arith.constant dense<0.000000e+00> : vector<8x128xf32>
    %223 = tpu.matmul %222, %3, %cst_61 {dimension_numbers = #tpu.dot_dimension_numbers<[1], [0], [0], [1], [0, 0, 1, 1], [], []>} : vector<8x64xf32>, vector<64x128xf32>, vector<8x128xf32> -> vector<8x128xf32>
    %224 = arith.addf %223, %6 : vector<8x128xf32>
    %225 = math.tanh %224 : vector<8x128xf32>
    %226 = vector.extract_strided_slice %225 {offsets = [0, 0], sizes = [8, 96], strides = [1, 1]} : vector<8x128xf32> to vector<8x96xf32>
    %cst_62 = arith.constant 5.000000e-01 : f32
    %227 = vector.broadcast %cst_62 : f32 to vector<8x96xf32>
    %228 = arith.mulf %227, %226 : vector<8x96xf32>
    %cst_63 = arith.constant 5.000000e-01 : f32
    %229 = vector.broadcast %cst_63 : f32 to vector<8x96xf32>
    %230 = arith.addf %228, %229 : vector<8x96xf32>
    %231 = vector.extract_strided_slice %225 {offsets = [0, 96], sizes = [8, 32], strides = [1, 1]} : vector<8x128xf32> to vector<8x32xf32>
    %232 = vector.extract_strided_slice %230 {offsets = [0, 0], sizes = [8, 32], strides = [1, 1]} : vector<8x96xf32> to vector<8x32xf32>
    %233 = vector.extract_strided_slice %230 {offsets = [0, 32], sizes = [8, 32], strides = [1, 1]} : vector<8x96xf32> to vector<8x32xf32>
    %234 = vector.extract_strided_slice %230 {offsets = [0, 64], sizes = [8, 32], strides = [1, 1]} : vector<8x96xf32> to vector<8x32xf32>
    %235 = arith.mulf %233, %200 : vector<8x32xf32>
    %236 = arith.mulf %232, %231 : vector<8x32xf32>
    %237 = arith.addf %235, %236 : vector<8x32xf32>
    %238 = math.tanh %237 : vector<8x32xf32>
    %239 = arith.mulf %234, %238 : vector<8x32xf32>
    %c40 = arith.constant 40 : index
    %c0_64 = arith.constant 0 : index
    %240 = vector.load %arg8[%c40, %c0_64] : memref<64x32xf32, #tpu.memory_space<vmem>>, vector<8x32xf32>
    tpu.vector_store %arg8[%c40, %c0_64], %239 {strides = array<i32>} : memref<64x32xf32, #tpu.memory_space<vmem>>, vector<8x32xf32>,
    %241 = vector.extract_strided_slice %10 {offsets = [48, 0], sizes = [8, 128], strides = [1, 1]} : vector<64x128xf32> to vector<8x128xf32>
    %cst_65 = arith.constant dense<0.000000e+00> : vector<8x128xf32>
    %242 = tpu.matmul %221, %1, %cst_65 {dimension_numbers = #tpu.dot_dimension_numbers<[1], [0], [0], [1], [0, 0, 1, 1], [], []>} : vector<8x32xf32>, vector<32x128xf32>, vector<8x128xf32> -> vector<8x128xf32>
    %243 = arith.addf %241, %242 : vector<8x128xf32>
    %244 = math.tanh %243 : vector<8x128xf32>
    %245 = vector.extract_strided_slice %244 {offsets = [0, 0], sizes = [8, 96], strides = [1, 1]} : vector<8x128xf32> to vector<8x96xf32>
    %cst_66 = arith.constant 5.000000e-01 : f32
    %246 = vector.broadcast %cst_66 : f32 to vector<8x96xf32>
    %247 = arith.mulf %246, %245 : vector<8x96xf32>
    %cst_67 = arith.constant 5.000000e-01 : f32
    %248 = vector.broadcast %cst_67 : f32 to vector<8x96xf32>
    %249 = arith.addf %247, %248 : vector<8x96xf32>
    %250 = vector.extract_strided_slice %244 {offsets = [0, 96], sizes = [8, 32], strides = [1, 1]} : vector<8x128xf32> to vector<8x32xf32>
    %251 = vector.extract_strided_slice %249 {offsets = [0, 0], sizes = [8, 32], strides = [1, 1]} : vector<8x96xf32> to vector<8x32xf32>
    %252 = vector.extract_strided_slice %249 {offsets = [0, 32], sizes = [8, 32], strides = [1, 1]} : vector<8x96xf32> to vector<8x32xf32>
    %253 = vector.extract_strided_slice %249 {offsets = [0, 64], sizes = [8, 32], strides = [1, 1]} : vector<8x96xf32> to vector<8x32xf32>
    %254 = arith.mulf %252, %219 : vector<8x32xf32>
    %255 = arith.mulf %251, %250 : vector<8x32xf32>
    %256 = arith.addf %254, %255 : vector<8x32xf32>
    %257 = math.tanh %256 : vector<8x32xf32>
    %258 = arith.mulf %253, %257 : vector<8x32xf32>
    %259 = tpu.concatenate %258, %239 in 1 : vector<8x32xf32>, vector<8x32xf32> -> vector<8x64xf32>
    %cst_68 = arith.constant dense<0.000000e+00> : vector<8x128xf32>
    %260 = tpu.matmul %259, %3, %cst_68 {dimension_numbers = #tpu.dot_dimension_numbers<[1], [0], [0], [1], [0, 0, 1, 1], [], []>} : vector<8x64xf32>, vector<64x128xf32>, vector<8x128xf32> -> vector<8x128xf32>
    %261 = arith.addf %260, %6 : vector<8x128xf32>
    %262 = math.tanh %261 : vector<8x128xf32>
    %263 = vector.extract_strided_slice %262 {offsets = [0, 0], sizes = [8, 96], strides = [1, 1]} : vector<8x128xf32> to vector<8x96xf32>
    %cst_69 = arith.constant 5.000000e-01 : f32
    %264 = vector.broadcast %cst_69 : f32 to vector<8x96xf32>
    %265 = arith.mulf %264, %263 : vector<8x96xf32>
    %cst_70 = arith.constant 5.000000e-01 : f32
    %266 = vector.broadcast %cst_70 : f32 to vector<8x96xf32>
    %267 = arith.addf %265, %266 : vector<8x96xf32>
    %268 = vector.extract_strided_slice %262 {offsets = [0, 96], sizes = [8, 32], strides = [1, 1]} : vector<8x128xf32> to vector<8x32xf32>
    %269 = vector.extract_strided_slice %267 {offsets = [0, 0], sizes = [8, 32], strides = [1, 1]} : vector<8x96xf32> to vector<8x32xf32>
    %270 = vector.extract_strided_slice %267 {offsets = [0, 32], sizes = [8, 32], strides = [1, 1]} : vector<8x96xf32> to vector<8x32xf32>
    %271 = vector.extract_strided_slice %267 {offsets = [0, 64], sizes = [8, 32], strides = [1, 1]} : vector<8x96xf32> to vector<8x32xf32>
    %272 = arith.mulf %270, %237 : vector<8x32xf32>
    %273 = arith.mulf %269, %268 : vector<8x32xf32>
    %274 = arith.addf %272, %273 : vector<8x32xf32>
    %275 = math.tanh %274 : vector<8x32xf32>
    %276 = arith.mulf %271, %275 : vector<8x32xf32>
    %c48 = arith.constant 48 : index
    %c0_71 = arith.constant 0 : index
    %277 = vector.load %arg8[%c48, %c0_71] : memref<64x32xf32, #tpu.memory_space<vmem>>, vector<8x32xf32>
    tpu.vector_store %arg8[%c48, %c0_71], %276 {strides = array<i32>} : memref<64x32xf32, #tpu.memory_space<vmem>>, vector<8x32xf32>,
    %278 = vector.extract_strided_slice %10 {offsets = [56, 0], sizes = [8, 128], strides = [1, 1]} : vector<64x128xf32> to vector<8x128xf32>
    %cst_72 = arith.constant dense<0.000000e+00> : vector<8x128xf32>
    %279 = tpu.matmul %258, %1, %cst_72 {dimension_numbers = #tpu.dot_dimension_numbers<[1], [0], [0], [1], [0, 0, 1, 1], [], []>} : vector<8x32xf32>, vector<32x128xf32>, vector<8x128xf32> -> vector<8x128xf32>
    %280 = arith.addf %278, %279 : vector<8x128xf32>
    %281 = math.tanh %280 : vector<8x128xf32>
    %282 = vector.extract_strided_slice %281 {offsets = [0, 0], sizes = [8, 96], strides = [1, 1]} : vector<8x128xf32> to vector<8x96xf32>
    %cst_73 = arith.constant 5.000000e-01 : f32
    %283 = vector.broadcast %cst_73 : f32 to vector<8x96xf32>
    %284 = arith.mulf %283, %282 : vector<8x96xf32>
    %cst_74 = arith.constant 5.000000e-01 : f32
    %285 = vector.broadcast %cst_74 : f32 to vector<8x96xf32>
    %286 = arith.addf %284, %285 : vector<8x96xf32>
    %287 = vector.extract_strided_slice %281 {offsets = [0, 96], sizes = [8, 32], strides = [1, 1]} : vector<8x128xf32> to vector<8x32xf32>
    %288 = vector.extract_strided_slice %286 {offsets = [0, 0], sizes = [8, 32], strides = [1, 1]} : vector<8x96xf32> to vector<8x32xf32>
    %289 = vector.extract_strided_slice %286 {offsets = [0, 32], sizes = [8, 32], strides = [1, 1]} : vector<8x96xf32> to vector<8x32xf32>
    %290 = vector.extract_strided_slice %286 {offsets = [0, 64], sizes = [8, 32], strides = [1, 1]} : vector<8x96xf32> to vector<8x32xf32>
    %291 = arith.mulf %289, %256 : vector<8x32xf32>
    %292 = arith.mulf %288, %287 : vector<8x32xf32>
    %293 = arith.addf %291, %292 : vector<8x32xf32>
    %294 = math.tanh %293 : vector<8x32xf32>
    %295 = arith.mulf %290, %294 : vector<8x32xf32>
    %296 = tpu.concatenate %295, %276 in 1 : vector<8x32xf32>, vector<8x32xf32> -> vector<8x64xf32>
    %cst_75 = arith.constant dense<0.000000e+00> : vector<8x128xf32>
    %297 = tpu.matmul %296, %3, %cst_75 {dimension_numbers = #tpu.dot_dimension_numbers<[1], [0], [0], [1], [0, 0, 1, 1], [], []>} : vector<8x64xf32>, vector<64x128xf32>, vector<8x128xf32> -> vector<8x128xf32>
    %298 = arith.addf %297, %6 : vector<8x128xf32>
    %299 = math.tanh %298 : vector<8x128xf32>
    %300 = vector.extract_strided_slice %299 {offsets = [0, 0], sizes = [8, 96], strides = [1, 1]} : vector<8x128xf32> to vector<8x96xf32>
    %cst_76 = arith.constant 5.000000e-01 : f32
    %301 = vector.broadcast %cst_76 : f32 to vector<8x96xf32>
    %302 = arith.mulf %301, %300 : vector<8x96xf32>
    %cst_77 = arith.constant 5.000000e-01 : f32
    %303 = vector.broadcast %cst_77 : f32 to vector<8x96xf32>
    %304 = arith.addf %302, %303 : vector<8x96xf32>
    %305 = vector.extract_strided_slice %299 {offsets = [0, 96], sizes = [8, 32], strides = [1, 1]} : vector<8x128xf32> to vector<8x32xf32>
    %306 = vector.extract_strided_slice %304 {offsets = [0, 0], sizes = [8, 32], strides = [1, 1]} : vector<8x96xf32> to vector<8x32xf32>
    %307 = vector.extract_strided_slice %304 {offsets = [0, 32], sizes = [8, 32], strides = [1, 1]} : vector<8x96xf32> to vector<8x32xf32>
    %308 = vector.extract_strided_slice %304 {offsets = [0, 64], sizes = [8, 32], strides = [1, 1]} : vector<8x96xf32> to vector<8x32xf32>
    %309 = arith.mulf %307, %274 : vector<8x32xf32>
    %310 = arith.mulf %306, %305 : vector<8x32xf32>
    %311 = arith.addf %309, %310 : vector<8x32xf32>
    %312 = math.tanh %311 : vector<8x32xf32>
    %313 = arith.mulf %308, %312 : vector<8x32xf32>
    %c56 = arith.constant 56 : index
    %c0_78 = arith.constant 0 : index
    %314 = vector.load %arg8[%c56, %c0_78] : memref<64x32xf32, #tpu.memory_space<vmem>>, vector<8x32xf32>
    tpu.vector_store %arg8[%c56, %c0_78], %313 {strides = array<i32>} : memref<64x32xf32, #tpu.memory_space<vmem>>, vector<8x32xf32>,
    %c0_79 = arith.constant 0 : index
    %c0_80 = arith.constant 0 : index
    %c0_81 = arith.constant 0 : index
    %315 = vector.load %arg9[%c0_79, %c0_80, %c0_81] : memref<2x8x32xf32, #tpu.memory_space<vmem>>, vector<1x8x32xf32>
    %316 = vector.shape_cast %315 : vector<1x8x32xf32> to vector<8x32xf32>
    %317 = vector.shape_cast %295 : vector<8x32xf32> to vector<1x8x32xf32>
    tpu.vector_store %arg9[%c0_79, %c0_80, %c0_81], %317 {strides = array<i32>} : memref<2x8x32xf32, #tpu.memory_space<vmem>>, vector<1x8x32xf32>,
    %c0_82 = arith.constant 0 : index
    %c0_83 = arith.constant 0 : index
    %c0_84 = arith.constant 0 : index
    %318 = vector.load %arg10[%c0_82, %c0_83, %c0_84] : memref<2x8x32xf32, #tpu.memory_space<vmem>>, vector<1x8x32xf32>
    %319 = vector.shape_cast %318 : vector<1x8x32xf32> to vector<8x32xf32>
    %320 = vector.shape_cast %293 : vector<8x32xf32> to vector<1x8x32xf32>
    tpu.vector_store %arg10[%c0_82, %c0_83, %c0_84], %320 {strides = array<i32>} : memref<2x8x32xf32, #tpu.memory_space<vmem>>, vector<1x8x32xf32>,
    %c1_85 = arith.constant 1 : index
    %c0_86 = arith.constant 0 : index
    %c0_87 = arith.constant 0 : index
    %321 = vector.load %arg9[%c1_85, %c0_86, %c0_87] : memref<2x8x32xf32, #tpu.memory_space<vmem>>, vector<1x8x32xf32>
    %322 = vector.shape_cast %321 : vector<1x8x32xf32> to vector<8x32xf32>
    %323 = vector.shape_cast %313 : vector<8x32xf32> to vector<1x8x32xf32>
    tpu.vector_store %arg9[%c1_85, %c0_86, %c0_87], %323 {strides = array<i32>} : memref<2x8x32xf32, #tpu.memory_space<vmem>>, vector<1x8x32xf32>,
    %c1_88 = arith.constant 1 : index
    %c0_89 = arith.constant 0 : index
    %c0_90 = arith.constant 0 : index
    %324 = vector.load %arg10[%c1_88, %c0_89, %c0_90] : memref<2x8x32xf32, #tpu.memory_space<vmem>>, vector<1x8x32xf32>
    %325 = vector.shape_cast %324 : vector<1x8x32xf32> to vector<8x32xf32>
    %326 = vector.shape_cast %311 : vector<8x32xf32> to vector<1x8x32xf32>
    tpu.vector_store %arg10[%c1_88, %c0_89, %c0_90], %326 {strides = array<i32>} : memref<2x8x32xf32, #tpu.memory_space<vmem>>, vector<1x8x32xf32>,
    return
  }
}

</mosaic_0001>

<llo_original>
// kernel: tpu_custom_call.1
$region0: #{tpu_custom_call.1}
  #allocation0 [shape = 'u32[]', space=smem, size = 0x4, offset = 0x4, fixed_abs, tag = 'smem constant byte address 0x4 - core index']
  #allocation1 [shape = 'u32[72,128]{1,0:T(1,128)}', space=vmem, size = 0x9000, scoped, tag = 'internal scratch']
  %s0 = inlined_call_operand.vmem [shape: f32[64,16], index: 0, kind: input, shape index: {}]
  %s1 = inlined_call_operand.vmem [shape: f32[2,8,32], index: 1, kind: input, shape index: {}]
  %s2 = inlined_call_operand.hbm [shape: f32[2,8,32], index: 2, kind: input, shape index: {}]
  %s3 = inlined_call_operand.hbm [shape: f32[16,128], index: 3, kind: input, shape index: {}]
  %s4 = inlined_call_operand.hbm [shape: f32[32,128], index: 4, kind: input, shape index: {}]
  %s5 = inlined_call_operand.vmem [shape: f32[1,128], index: 5, kind: input, shape index: {}]
  %s6 = inlined_call_operand.vmem [shape: f32[64,128], index: 6, kind: input, shape index: {}]
  %s7 = inlined_call_operand.vmem [shape: f32[1,128], index: 7, kind: input, shape index: {}]
  %s8 = inlined_call_operand.vmem [shape: f32[64,32], index: 8, kind: output, shape index: {0}]
  %s9 = inlined_call_operand.hbm [shape: f32[2,8,32], index: 9, kind: output, shape index: {1}]
  %s10 = inlined_call_operand.hbm [shape: f32[2,8,32], index: 10, kind: output, shape index: {2}]
  %11 = xla_tuple %s8, %s9, %s10
  %s12 = sld [smem:[#allocation0]]
  $region70: #{tpu_custom_call.1} parent=0
    _
  %s14 = ssub.s32 1, %s12
  %s15 = scalar_select 0, %s14, %s12
  $region1: #{tpu_custom_call.1} parent=0
    #allocation2 [shape = 'u8[8192]{0}', space=vmem, size = 0x2000, scoped, tag = 'input window, operand 2, single buffered']
    #allocation3 [shape = 's32[1]{0}', space=sflag, size = 0x4, scoped, tag = 'scoped memory for tpu_custom_call.1']
    #allocation4 [shape = 's32[1]{0}', space=sflag, size = 0x4, scoped, tag = 'scoped memory for tpu_custom_call.1']
    #allocation5 [shape = 'u8[8192]{0}', space=vmem, size = 0x2000, scoped, tag = 'input window, operand 3, single buffered']
    #allocation6 [shape = 's32[1]{0}', space=sflag, size = 0x4, scoped, tag = 'scoped memory for tpu_custom_call.1']
    #allocation7 [shape = 'u8[16384]{0}', space=vmem, size = 0x4000, scoped, tag = 'input window, operand 4, single buffered']
    #allocation8 [shape = 'u8[8192]{0}', space=vmem, size = 0x2000, scoped, tag = 'output window, operand 1, single buffered']
    #allocation9 [shape = 'u8[8192]{0}', space=vmem, size = 0x2000, scoped, tag = 'output window, operand 2, single buffered']
    #allocation10 [shape = 's32[1]{0}', space=sflag, size = 0x4, scoped, tag = 'scoped memory for tpu_custom_call.1']
    %16 = vsyncpa [#allocation3], 0
    %17 = vsyncpa [#allocation6], 0
    %18 = vsyncpa [#allocation4], 0
    %19 = vsyncpa [#allocation10], 0
    // Predicated region
    $region2: #{tpu_custom_call.1} parent=1 // pred_check
      _
    $region3: #{tpu_custom_call.1} parent=1 // pred_check_branch
      %21 = sbr.rel (0) target = $region5
    $region4: #{tpu_custom_call.1} parent=1 // pred_region
      _
    $region5: #{tpu_custom_call.1} parent=1 // pred_fallthru
      _
    // Predicated region
    $region6: #{tpu_custom_call.1} parent=1 // pred_check
      _
    $region7: #{tpu_custom_call.1} parent=1 // pred_check_branch
      %23 = sbr.rel (0) target = $region9
    $region8: #{tpu_custom_call.1} parent=1 // pred_region
      _
    $region9: #{tpu_custom_call.1} parent=1 // pred_fallthru
      _
    // Predicated region
    $region10: #{tpu_custom_call.1} parent=1 // pred_check
      _
    $region11: #{tpu_custom_call.1} parent=1 // pred_check_branch
      %25 = sbr.rel (0) target = $region13
    $region12: #{tpu_custom_call.1} parent=1 // pred_region
      %27 = vsyncadd [#allocation3], 0
      %s28 = sshll.u32 %s2, 4
      %s29 = int_to_ptr.hbm [resolvable:$true] %s28
      %s30 = sshll.u32 [#allocation2], 4
      %s31 = int_to_ptr.vmem [resolvable:$true] %s30
      %36 = dma.hbm_to_vmem [thread:$0]  %s29, 256, %s31, [#allocation3], 128, 128, 8
    $region13: #{tpu_custom_call.1} parent=1 // pred_fallthru
      _
    // Predicated region
    $region14: #{tpu_custom_call.1} parent=1 // pred_check
      _
    $region15: #{tpu_custom_call.1} parent=1 // pred_check_branch
      %38 = sbr.rel (0) target = $region17
    $region16: #{tpu_custom_call.1} parent=1 // pred_region
      %40 = vsyncadd [#allocation6], 0
      %s41 = sshll.u32 %s3, 4
      %s42 = int_to_ptr.hbm [resolvable:$true] %s41
      %s43 = sshll.u32 [#allocation5], 4
      %s44 = int_to_ptr.vmem [resolvable:$true] %s43
      %49 = dma.hbm_to_vmem [thread:$0]  %s42, 256, %s44, [#allocation6], 128, 128, 8
    $region17: #{tpu_custom_call.1} parent=1 // pred_fallthru
      _
    // Predicated region
    $region18: #{tpu_custom_call.1} parent=1 // pred_check
      _
    $region19: #{tpu_custom_call.1} parent=1 // pred_check_branch
      %51 = sbr.rel (0) target = $region21
    $region20: #{tpu_custom_call.1} parent=1 // pred_region
      %53 = vsyncadd [#allocation6], 0
      %s54 = sshll.u32 %s4, 4
      %s55 = int_to_ptr.hbm [resolvable:$true] %s54
      %s56 = sshll.u32 [#allocation7], 4
      %s57 = int_to_ptr.vmem [resolvable:$true] %s56
      %62 = dma.hbm_to_vmem [thread:$0]  %s55, 512, %s57, [#allocation6], 128, 128, 8
    $region21: #{tpu_custom_call.1} parent=1 // pred_fallthru
      _
    // Predicated region
    $region22: #{tpu_custom_call.1} parent=1 // pred_check
      _
    $region23: #{tpu_custom_call.1} parent=1 // pred_check_branch
      %64 = sbr.rel (0) target = $region25
    $region24: #{tpu_custom_call.1} parent=1 // pred_region
      _
    $region25: #{tpu_custom_call.1} parent=1 // pred_fallthru
      _
    // Predicated region
    $region26: #{tpu_custom_call.1} parent=1 // pred_check
      _
    $region27: #{tpu_custom_call.1} parent=1 // pred_check_branch
      %66 = sbr.rel (0) target = $region29
    $region28: #{tpu_custom_call.1} parent=1 // pred_region
      _
    $region29: #{tpu_custom_call.1} parent=1 // pred_fallthru
      _
    // Predicated region
    $region30: #{tpu_custom_call.1} parent=1 // pred_check
      _
    $region31: #{tpu_custom_call.1} parent=1 // pred_check_branch
      %68 = sbr.rel (0) target = $region33
    $region32: #{tpu_custom_call.1} parent=1 // pred_region
      _
    $region33: #{tpu_custom_call.1} parent=1 // pred_fallthru
      _
    // Predicated region
    $region34: #{tpu_custom_call.1} parent=1 // pred_check
      _
    $region35: #{tpu_custom_call.1} parent=1 // pred_check_branch
      %70 = sbr.rel (0) target = $region37
    $region36: #{tpu_custom_call.1} parent=1 // pred_region
      %72 = dma.done [#allocation3], 256
    $region37: #{tpu_custom_call.1} parent=1 // pred_fallthru
      _
    // Predicated region
    $region38: #{tpu_custom_call.1} parent=1 // pred_check
      _
    $region39: #{tpu_custom_call.1} parent=1 // pred_check_branch
      %74 = sbr.rel (0) target = $region41
    $region40: #{tpu_custom_call.1} parent=1 // pred_region
      %76 = dma.done [#allocation6], 256
    $region41: #{tpu_custom_call.1} parent=1 // pred_fallthru
      _
    // Predicated region
    $region42: #{tpu_custom_call.1} parent=1 // pred_check
      _
    $region43: #{tpu_custom_call.1} parent=1 // pred_check_branch
      %78 = sbr.rel (0) target = $region45
    $region44: #{tpu_custom_call.1} parent=1 // pred_region
      %80 = dma.done [#allocation6], 512
    $region45: #{tpu_custom_call.1} parent=1 // pred_fallthru
      _
    %v81 = vld [vmem:[#allocation5] sm:$0xff]
    %v82 = vld [vmem:[#allocation5 + $0x8] sm:$0xff]
    %v83 = vld [vmem:[#allocation7] sm:$0xff]
    %v84 = vld [vmem:[#allocation7 + $0x8] sm:$0xff]
    %v85 = vld [vmem:[#allocation7 + $0x10] sm:$0xff]
    %v86 = vld [vmem:[#allocation7 + $0x18] sm:$0xff]
    %v87 = vld [vmem:[%s5] sm:$0x1]
    %v88 = vld [vmem:[%s6] sm:$0xff]
    %v89 = vld [vmem:[%s6 + $0x8] sm:$0xff]
    %v90 = vld [vmem:[%s6 + $0x10] sm:$0xff]
    %v91 = vld [vmem:[%s6 + $0x18] sm:$0xff]
    %v92 = vld [vmem:[%s6 + $0x20] sm:$0xff]
    %v93 = vld [vmem:[%s6 + $0x28] sm:$0xff]
    %v94 = vld [vmem:[%s6 + $0x30] sm:$0xff]
    %v95 = vld [vmem:[%s6 + $0x38] sm:$0xff]
    %v96 = vld [vmem:[%s7] sm:$0x1]
    %v98 = vperm.slane %v96, 0
    %v100 = vld [vmem:[%s0] sm:$0xff]
    %v101 = vld [vmem:[%s0 + $0x8] sm:$0xff]
    %v102 = vld [vmem:[%s0 + $0x10] sm:$0xff]
    %v103 = vld [vmem:[%s0 + $0x18] sm:$0xff]
    %v104 = vld [vmem:[%s0 + $0x20] sm:$0xff]
    %v105 = vld [vmem:[%s0 + $0x28] sm:$0xff]
    %v106 = vld [vmem:[%s0 + $0x30] sm:$0xff]
    %v107 = vld [vmem:[%s0 + $0x38] sm:$0xff]
    %v109 = vperm.slane %v87, 0
    %vm111 = vcmask 130048
    %v113 = vsel %vm111, %v100, 0
    %v116 = vsel %vm111, %v101, 0
    %v119 = vsel %vm111, %v102, 0
    %v122 = vsel %vm111, %v103, 0
    %v125 = vsel %vm111, %v104, 0
    %v128 = vsel %vm111, %v105, 0
    %v131 = vsel %vm111, %v106, 0
    %v134 = vsel %vm111, %v107, 0
    %136 = vmatpush.msra.mxu0 0.0
    %137 = vmatpush.msra.mxu0 0.0
    %138 = vmatpush.msra.mxu0 0.0
    %139 = vmatpush.msra.mxu0 0.0
    %140 = vmatpush.msra.mxu0 0.0
    %141 = vmatpush.msra.mxu0 0.0
    %142 = vmatpush.msra.mxu0 0.0
    %143 = vmatpush.msra.mxu0 0.0
    %144 = vmatpush.msra.mxu0 0.0
    %145 = vmatpush.msra.mxu0 0.0
    %146 = vmatpush.msra.mxu0 0.0
    %147 = vmatpush.msra.mxu0 0.0
    %148 = vmatpush.msra.mxu0 0.0
    %149 = vmatpush.msra.mxu0 0.0
    %150 = vmatpush.msra.mxu0 %v82
    %151 = vmatpush.msra.mxu0 %v81
    %152 = vmatmul.f32.gmra.mxu0 %v113
    %v153 = vpop.f32.mrf.mxu0
    %v154 = vadd.f32 %v109, %v153
    %155 = vmatmul.f32.gmra.mxu0 %v116
    %v156 = vpop.f32.mrf.mxu0
    %v157 = vadd.f32 %v109, %v156
    %158 = vmatmul.f32.gmra.mxu0 %v119
    %v159 = vpop.f32.mrf.mxu0
    %v160 = vadd.f32 %v109, %v159
    %161 = vmatmul.f32.gmra.mxu0 %v122
    %v162 = vpop.f32.mrf.mxu0
    %v163 = vadd.f32 %v109, %v162
    %164 = vmatmul.f32.gmra.mxu0 %v125
    %v165 = vpop.f32.mrf.mxu0
    %v166 = vadd.f32 %v109, %v165
    %167 = vmatmul.f32.gmra.mxu0 %v128
    %v168 = vpop.f32.mrf.mxu0
    %v169 = vadd.f32 %v109, %v168
    %170 = vmatmul.f32.gmra.mxu0 %v131
    %v171 = vpop.f32.mrf.mxu0
    %v172 = vadd.f32 %v109, %v171
    %173 = vmatmul.f32.gmra.mxu0 %v134
    %v174 = vpop.f32.mrf.mxu0
    %v175 = vadd.f32 %v109, %v174
    %176 = vdwg.mxu0
    %v177 = vld [vmem:[%s1] sm:$0xff]
    %s178 = scalar_lea.vmem %s1, 8
    %v179 = vld [vmem:[%s178] sm:$0xff]
    %v180 = vld [vmem:[#allocation2] sm:$0xff]
    %s181 = scalar_lea.vmem [#allocation2], 8
    %v182 = vld [vmem:[%s181] sm:$0xff]
    %vm183 = vcmask 261120
    %v185 = vsel %vm183, %v177, 0
    %187 = vmatpush.msra.mxu0 0.0
    %188 = vmatpush.msra.mxu0 0.0
    %189 = vmatpush.msra.mxu0 0.0
    %190 = vmatpush.msra.mxu0 0.0
    %191 = vmatpush.msra.mxu0 0.0
    %192 = vmatpush.msra.mxu0 0.0
    %193 = vmatpush.msra.mxu0 0.0
    %194 = vmatpush.msra.mxu0 0.0
    %195 = vmatpush.msra.mxu0 0.0
    %196 = vmatpush.msra.mxu0 0.0
    %197 = vmatpush.msra.mxu0 0.0
    %198 = vmatpush.msra.mxu0 0.0
    %199 = vmatpush.msra.mxu0 %v86
    %200 = vmatpush.msra.mxu0 %v85
    %201 = vmatpush.msra.mxu0 %v84
    %202 = vmatpush.msra.mxu0 %v83
    %203 = vmatmul.f32.gmra.mxu0 %v185
    %v204 = vpop.f32.mrf.mxu0
    %v205 = vadd.f32 0.0, %v204
    %206 = vdwg.mxu0
    %v207 = vadd.f32 %v154, %v205
    %v208 = vtanh.pop %v207
    %v209 = vmul.f32 %v208, 0.5
    %v210 = vadd.f32 %v209, 0.5
    %212 = vrot.lane.b32.xlu0 %v180, 32
    %v213 = vpop.permute.xlu0 %212
    %v215 = vmul.f32 %v210, %v213
    %217 = vrot.lane.b32.xlu0 %v208, 32
    %v218 = vpop.permute.xlu0 %217
    %v220 = vmul.f32 %v210, %v218
    %222 = vrot.lane.b32.xlu0 %v220, 32
    %v223 = vpop.permute.xlu0 %222
    %v225 = vadd.f32 %v215, %v223
    %v226 = vtanh.pop %v225
    %228 = vrot.lane.b32.xlu0 %v226, 32
    %v229 = vpop.permute.xlu0 %228
    %v231 = vmul.f32 %v210, %v229
    %233 = vrot.lane.b32.xlu0 %v231, 64
    %v234 = vpop.permute.xlu0 %233
    %237 = vrot.lane.b32.xlu0 %v179, 32
    %v238 = vpop.permute.xlu0 %237
    %v240 = vsel %vm183, %v234, %v238
    %vm241 = vcmask 523264
    %v243 = vsel %vm241, %v240, 0
    %245 = vmatpush.msra.mxu0 0.0
    %246 = vmatpush.msra.mxu0 0.0
    %247 = vmatpush.msra.mxu0 0.0
    %248 = vmatpush.msra.mxu0 0.0
    %249 = vmatpush.msra.mxu0 0.0
    %250 = vmatpush.msra.mxu0 0.0
    %251 = vmatpush.msra.mxu0 0.0
    %252 = vmatpush.msra.mxu0 0.0
    %253 = vmatpush.msra.mxu0 %v95
    %254 = vmatpush.msra.mxu0 %v94
    %255 = vmatpush.msra.mxu0 %v93
    %256 = vmatpush.msra.mxu0 %v92
    %257 = vmatpush.msra.mxu0 %v91
    %258 = vmatpush.msra.mxu0 %v90
    %259 = vmatpush.msra.mxu0 %v89
    %260 = vmatpush.msra.mxu0 %v88
    %261 = vmatmul.f32.gmra.mxu0 %v243
    %v262 = vpop.f32.mrf.mxu0
    %v263 = vadd.f32 %v98, %v262
    %264 = vdwg.mxu0
    %v265 = vtanh.pop %v263
    %v266 = vmul.f32 %v265, 0.5
    %v267 = vadd.f32 %v266, 0.5
    %269 = vrot.lane.b32.xlu0 %v182, 32
    %v270 = vpop.permute.xlu0 %269
    %v272 = vmul.f32 %v267, %v270
    %274 = vrot.lane.b32.xlu0 %v265, 32
    %v275 = vpop.permute.xlu0 %274
    %v277 = vmul.f32 %v267, %v275
    %279 = vrot.lane.b32.xlu0 %v277, 32
    %v280 = vpop.permute.xlu0 %279
    %v282 = vadd.f32 %v272, %v280
    %v283 = vtanh.pop %v282
    %285 = vrot.lane.b32.xlu0 %v283, 32
    %v286 = vpop.permute.xlu0 %285
    %v288 = vmul.f32 %v267, %v286
    %290 = vrot.lane.b32.xlu0 %v288, 64
    %v291 = vpop.permute.xlu0 %290
    %293 = vst.msk [vmem:[%s8] sm:$0xff] %vm183, %v291
    %v294 = vsel %vm183, %v234, 0
    %296 = vmatpush.msra.mxu0 0.0
    %297 = vmatpush.msra.mxu0 0.0
    %298 = vmatpush.msra.mxu0 0.0
    %299 = vmatpush.msra.mxu0 0.0
    %300 = vmatpush.msra.mxu0 0.0
    %301 = vmatpush.msra.mxu0 0.0
    %302 = vmatpush.msra.mxu0 0.0
    %303 = vmatpush.msra.mxu0 0.0
    %304 = vmatpush.msra.mxu0 0.0
    %305 = vmatpush.msra.mxu0 0.0
    %306 = vmatpush.msra.mxu0 0.0
    %307 = vmatpush.msra.mxu0 0.0
    %308 = vmatpush.msra.mxu0 %v86
    %309 = vmatpush.msra.mxu0 %v85
    %310 = vmatpush.msra.mxu0 %v84
    %311 = vmatpush.msra.mxu0 %v83
    %312 = vmatmul.f32.gmra.mxu0 %v294
    %v313 = vpop.f32.mrf.mxu0
    %v314 = vadd.f32 0.0, %v313
    %315 = vdwg.mxu0
    %v316 = vadd.f32 %v157, %v314
    %v317 = vtanh.pop %v316
    %v318 = vmul.f32 %v317, 0.5
    %v319 = vadd.f32 %v318, 0.5
    %v320 = vmul.f32 %v319, %v225
    %322 = vrot.lane.b32.xlu0 %v317, 32
    %v323 = vpop.permute.xlu0 %322
    %v325 = vmul.f32 %v319, %v323
    %327 = vrot.lane.b32.xlu0 %v325, 32
    %v328 = vpop.permute.xlu0 %327
    %v330 = vadd.f32 %v320, %v328
    %v331 = vtanh.pop %v330
    %333 = vrot.lane.b32.xlu0 %v331, 32
    %v334 = vpop.permute.xlu0 %333
    %v336 = vmul.f32 %v319, %v334
    %338 = vrot.lane.b32.xlu0 %v336, 64
    %v339 = vpop.permute.xlu0 %338
    %341 = vrot.lane.b32.xlu0 %v288, 96
    %v342 = vpop.permute.xlu0 %341
    %v344 = vsel %vm183, %v339, %v342
    %v346 = vsel %vm241, %v344, 0
    %348 = vmatpush.msra.mxu0 0.0
    %349 = vmatpush.msra.mxu0 0.0
    %350 = vmatpush.msra.mxu0 0.0
    %351 = vmatpush.msra.mxu0 0.0
    %352 = vmatpush.msra.mxu0 0.0
    %353 = vmatpush.msra.mxu0 0.0
    %354 = vmatpush.msra.mxu0 0.0
    %355 = vmatpush.msra.mxu0 0.0
    %356 = vmatpush.msra.mxu0 %v95
    %357 = vmatpush.msra.mxu0 %v94
    %358 = vmatpush.msra.mxu0 %v93
    %359 = vmatpush.msra.mxu0 %v92
    %360 = vmatpush.msra.mxu0 %v91
    %361 = vmatpush.msra.mxu0 %v90
    %362 = vmatpush.msra.mxu0 %v89
    %363 = vmatpush.msra.mxu0 %v88
    %364 = vmatmul.f32.gmra.mxu0 %v346
    %v365 = vpop.f32.mrf.mxu0
    %v366 = vadd.f32 %v98, %v365
    %367 = vdwg.mxu0
    %v368 = vtanh.pop %v366
    %v369 = vmul.f32 %v368, 0.5
    %v370 = vadd.f32 %v369, 0.5
    %v371 = vmul.f32 %v370, %v282
    %373 = vrot.lane.b32.xlu0 %v368, 32
    %v374 = vpop.permute.xlu0 %373
    %v376 = vmul.f32 %v370, %v374
    %378 = vrot.lane.b32.xlu0 %v376, 32
    %v379 = vpop.permute.xlu0 %378
    %v381 = vadd.f32 %v371, %v379
    %v382 = vtanh.pop %v381
    %384 = vrot.lane.b32.xlu0 %v382, 32
    %v385 = vpop.permute.xlu0 %384
    %v387 = vmul.f32 %v370, %v385
    %389 = vrot.lane.b32.xlu0 %v387, 64
    %v390 = vpop.permute.xlu0 %389
    %392 = vst.msk [vmem:[%s8 + $0x8] sm:$0xff] %vm183, %v390
    %v393 = vsel %vm183, %v339, 0
    %395 = vmatpush.msra.mxu0 0.0
    %396 = vmatpush.msra.mxu0 0.0
    %397 = vmatpush.msra.mxu0 0.0
    %398 = vmatpush.msra.mxu0 0.0
    %399 = vmatpush.msra.mxu0 0.0
    %400 = vmatpush.msra.mxu0 0.0
    %401 = vmatpush.msra.mxu0 0.0
    %402 = vmatpush.msra.mxu0 0.0
    %403 = vmatpush.msra.mxu0 0.0
    %404 = vmatpush.msra.mxu0 0.0
    %405 = vmatpush.msra.mxu0 0.0
    %406 = vmatpush.msra.mxu0 0.0
    %407 = vmatpush.msra.mxu0 %v86
    %408 = vmatpush.msra.mxu0 %v85
    %409 = vmatpush.msra.mxu0 %v84
    %410 = vmatpush.msra.mxu0 %v83
    %411 = vmatmul.f32.gmra.mxu0 %v393
    %v412 = vpop.f32.mrf.mxu0
    %v413 = vadd.f32 0.0, %v412
    %414 = vdwg.mxu0
    %v415 = vadd.f32 %v160, %v413
    %v416 = vtanh.pop %v415
    %v417 = vmul.f32 %v416, 0.5
    %v418 = vadd.f32 %v417, 0.5
    %v419 = vmul.f32 %v418, %v330
    %421 = vrot.lane.b32.xlu0 %v416, 32
    %v422 = vpop.permute.xlu0 %421
    %v424 = vmul.f32 %v418, %v422
    %426 = vrot.lane.b32.xlu0 %v424, 32
    %v427 = vpop.permute.xlu0 %426
    %v429 = vadd.f32 %v419, %v427
    %v430 = vtanh.pop %v429
    %432 = vrot.lane.b32.xlu0 %v430, 32
    %v433 = vpop.permute.xlu0 %432
    %v435 = vmul.f32 %v418, %v433
    %437 = vrot.lane.b32.xlu0 %v435, 64
    %v438 = vpop.permute.xlu0 %437
    %440 = vrot.lane.b32.xlu0 %v387, 96
    %v441 = vpop.permute.xlu0 %440
    %v443 = vsel %vm183, %v438, %v441
    %v445 = vsel %vm241, %v443, 0
    %447 = vmatpush.msra.mxu0 0.0
    %448 = vmatpush.msra.mxu0 0.0
    %449 = vmatpush.msra.mxu0 0.0
    %450 = vmatpush.msra.mxu0 0.0
    %451 = vmatpush.msra.mxu0 0.0
    %452 = vmatpush.msra.mxu0 0.0
    %453 = vmatpush.msra.mxu0 0.0
    %454 = vmatpush.msra.mxu0 0.0
    %455 = vmatpush.msra.mxu0 %v95
    %456 = vmatpush.msra.mxu0 %v94
    %457 = vmatpush.msra.mxu0 %v93
    %458 = vmatpush.msra.mxu0 %v92
    %459 = vmatpush.msra.mxu0 %v91
    %460 = vmatpush.msra.mxu0 %v90
    %461 = vmatpush.msra.mxu0 %v89
    %462 = vmatpush.msra.mxu0 %v88
    %463 = vmatmul.f32.gmra.mxu0 %v445
    %v464 = vpop.f32.mrf.mxu0
    %v465 = vadd.f32 %v98, %v464
    %466 = vdwg.mxu0
    %v467 = vtanh.pop %v465
    %v468 = vmul.f32 %v467, 0.5
    %v469 = vadd.f32 %v468, 0.5
    %v470 = vmul.f32 %v469, %v381
    %472 = vrot.lane.b32.xlu0 %v467, 32
    %v473 = vpop.permute.xlu0 %472
    %v475 = vmul.f32 %v469, %v473
    %477 = vrot.lane.b32.xlu0 %v475, 32
    %v478 = vpop.permute.xlu0 %477
    %v480 = vadd.f32 %v470, %v478
    %v481 = vtanh.pop %v480
    %483 = vrot.lane.b32.xlu0 %v481, 32
    %v484 = vpop.permute.xlu0 %483
    %v486 = vmul.f32 %v469, %v484
    %488 = vrot.lane.b32.xlu0 %v486, 64
    %v489 = vpop.permute.xlu0 %488
    %491 = vst.msk [vmem:[%s8 + $0x10] sm:$0xff] %vm183, %v489
    %v492 = vsel %vm183, %v438, 0
    %494 = vmatpush.msra.mxu0 0.0
    %495 = vmatpush.msra.mxu0 0.0
    %496 = vmatpush.msra.mxu0 0.0
    %497 = vmatpush.msra.mxu0 0.0
    %498 = vmatpush.msra.mxu0 0.0
    %499 = vmatpush.msra.mxu0 0.0
    %500 = vmatpush.msra.mxu0 0.0
    %501 = vmatpush.msra.mxu0 0.0
    %502 = vmatpush.msra.mxu0 0.0
    %503 = vmatpush.msra.mxu0 0.0
    %504 = vmatpush.msra.mxu0 0.0
    %505 = vmatpush.msra.mxu0 0.0
    %506 = vmatpush.msra.mxu0 %v86
    %507 = vmatpush.msra.mxu0 %v85
    %508 = vmatpush.msra.mxu0 %v84
    %509 = vmatpush.msra.mxu0 %v83
    %510 = vmatmul.f32.gmra.mxu0 %v492
    %v511 = vpop.f32.mrf.mxu0
    %v512 = vadd.f32 0.0, %v511
    %513 = vdwg.mxu0
    %v514 = vadd.f32 %v163, %v512
    %v515 = vtanh.pop %v514
    %v516 = vmul.f32 %v515, 0.5
    %v517 = vadd.f32 %v516, 0.5
    %v518 = vmul.f32 %v517, %v429
    %520 = vrot.lane.b32.xlu0 %v515, 32
    %v521 = vpop.permute.xlu0 %520
    %v523 = vmul.f32 %v517, %v521
    %525 = vrot.lane.b32.xlu0 %v523, 32
    %v526 = vpop.permute.xlu0 %525
    %v528 = vadd.f32 %v518, %v526
    %v529 = vtanh.pop %v528
    %531 = vrot.lane.b32.xlu0 %v529, 32
    %v532 = vpop.permute.xlu0 %531
    %v534 = vmul.f32 %v517, %v532
    %536 = vrot.lane.b32.xlu0 %v534, 64
    %v537 = vpop.permute.xlu0 %536
    %539 = vrot.lane.b32.xlu0 %v486, 96
    %v540 = vpop.permute.xlu0 %539
    %v542 = vsel %vm183, %v537, %v540
    %v544 = vsel %vm241, %v542, 0
    %546 = vmatpush.msra.mxu0 0.0
    %547 = vmatpush.msra.mxu0 0.0
    %548 = vmatpush.msra.mxu0 0.0
    %549 = vmatpush.msra.mxu0 0.0
    %550 = vmatpush.msra.mxu0 0.0
    %551 = vmatpush.msra.mxu0 0.0
    %552 = vmatpush.msra.mxu0 0.0
    %553 = vmatpush.msra.mxu0 0.0
    %554 = vmatpush.msra.mxu0 %v95
    %555 = vmatpush.msra.mxu0 %v94
    %556 = vmatpush.msra.mxu0 %v93
    %557 = vmatpush.msra.mxu0 %v92
    %558 = vmatpush.msra.mxu0 %v91
    %559 = vmatpush.msra.mxu0 %v90
    %560 = vmatpush.msra.mxu0 %v89
    %561 = vmatpush.msra.mxu0 %v88
    %562 = vmatmul.f32.gmra.mxu0 %v544
    %v563 = vpop.f32.mrf.mxu0
    %v564 = vadd.f32 %v98, %v563
    %565 = vdwg.mxu0
    %v566 = vtanh.pop %v564
    %v567 = vmul.f32 %v566, 0.5
    %v568 = vadd.f32 %v567, 0.5
    %v569 = vmul.f32 %v568, %v480
    %571 = vrot.lane.b32.xlu0 %v566, 32
    %v572 = vpop.permute.xlu0 %571
    %v574 = vmul.f32 %v568, %v572
    %576 = vrot.lane.b32.xlu0 %v574, 32
    %v577 = vpop.permute.xlu0 %576
    %v579 = vadd.f32 %v569, %v577
    %v580 = vtanh.pop %v579
    %582 = vrot.lane.b32.xlu0 %v580, 32
    %v583 = vpop.permute.xlu0 %582
    %v585 = vmul.f32 %v568, %v583
    %587 = vrot.lane.b32.xlu0 %v585, 64
    %v588 = vpop.permute.xlu0 %587
    %590 = vst.msk [vmem:[%s8 + $0x18] sm:$0xff] %vm183, %v588
    %v591 = vsel %vm183, %v537, 0
    %593 = vmatpush.msra.mxu0 0.0
    %594 = vmatpush.msra.mxu0 0.0
    %595 = vmatpush.msra.mxu0 0.0
    %596 = vmatpush.msra.mxu0 0.0
    %597 = vmatpush.msra.mxu0 0.0
    %598 = vmatpush.msra.mxu0 0.0
    %599 = vmatpush.msra.mxu0 0.0
    %600 = vmatpush.msra.mxu0 0.0
    %601 = vmatpush.msra.mxu0 0.0
    %602 = vmatpush.msra.mxu0 0.0
    %603 = vmatpush.msra.mxu0 0.0
    %604 = vmatpush.msra.mxu0 0.0
    %605 = vmatpush.msra.mxu0 %v86
    %606 = vmatpush.msra.mxu0 %v85
    %607 = vmatpush.msra.mxu0 %v84
    %608 = vmatpush.msra.mxu0 %v83
    %609 = vmatmul.f32.gmra.mxu0 %v591
    %v610 = vpop.f32.mrf.mxu0
    %v611 = vadd.f32 0.0, %v610
    %612 = vdwg.mxu0
    %v613 = vadd.f32 %v166, %v611
    %v614 = vtanh.pop %v613
    %v615 = vmul.f32 %v614, 0.5
    %v616 = vadd.f32 %v615, 0.5
    %v617 = vmul.f32 %v616, %v528
    %619 = vrot.lane.b32.xlu0 %v614, 32
    %v620 = vpop.permute.xlu0 %619
    %v622 = vmul.f32 %v616, %v620
    %624 = vrot.lane.b32.xlu0 %v622, 32
    %v625 = vpop.permute.xlu0 %624
    %v627 = vadd.f32 %v617, %v625
    %v628 = vtanh.pop %v627
    %630 = vrot.lane.b32.xlu0 %v628, 32
    %v631 = vpop.permute.xlu0 %630
    %v633 = vmul.f32 %v616, %v631
    %635 = vrot.lane.b32.xlu0 %v633, 64
    %v636 = vpop.permute.xlu0 %635
    %638 = vrot.lane.b32.xlu0 %v585, 96
    %v639 = vpop.permute.xlu0 %638
    %v641 = vsel %vm183, %v636, %v639
    %v643 = vsel %vm241, %v641, 0
    %645 = vmatpush.msra.mxu0 0.0
    %646 = vmatpush.msra.mxu0 0.0
    %647 = vmatpush.msra.mxu0 0.0
    %648 = vmatpush.msra.mxu0 0.0
    %649 = vmatpush.msra.mxu0 0.0
    %650 = vmatpush.msra.mxu0 0.0
    %651 = vmatpush.msra.mxu0 0.0
    %652 = vmatpush.msra.mxu0 0.0
    %653 = vmatpush.msra.mxu0 %v95
    %654 = vmatpush.msra.mxu0 %v94
    %655 = vmatpush.msra.mxu0 %v93
    %656 = vmatpush.msra.mxu0 %v92
    %657 = vmatpush.msra.mxu0 %v91
    %658 = vmatpush.msra.mxu0 %v90
    %659 = vmatpush.msra.mxu0 %v89
    %660 = vmatpush.msra.mxu0 %v88
    %661 = vmatmul.f32.gmra.mxu0 %v643
    %v662 = vpop.f32.mrf.mxu0
    %v663 = vadd.f32 %v98, %v662
    %664 = vdwg.mxu0
    %v665 = vtanh.pop %v663
    %v666 = vmul.f32 %v665, 0.5
    %v667 = vadd.f32 %v666, 0.5
    %v668 = vmul.f32 %v667, %v579
    %670 = vrot.lane.b32.xlu0 %v665, 32
    %v671 = vpop.permute.xlu0 %670
    %v673 = vmul.f32 %v667, %v671
    %675 = vrot.lane.b32.xlu0 %v673, 32
    %v676 = vpop.permute.xlu0 %675
    %v678 = vadd.f32 %v668, %v676
    %v679 = vtanh.pop %v678
    %681 = vrot.lane.b32.xlu0 %v679, 32
    %v682 = vpop.permute.xlu0 %681
    %v684 = vmul.f32 %v667, %v682
    %686 = vrot.lane.b32.xlu0 %v684, 64
    %v687 = vpop.permute.xlu0 %686
    %689 = vst.msk [vmem:[%s8 + $0x20] sm:$0xff] %vm183, %v687
    %v690 = vsel %vm183, %v636, 0
    %692 = vmatpush.msra.mxu0 0.0
    %693 = vmatpush.msra.mxu0 0.0
    %694 = vmatpush.msra.mxu0 0.0
    %695 = vmatpush.msra.mxu0 0.0
    %696 = vmatpush.msra.mxu0 0.0
    %697 = vmatpush.msra.mxu0 0.0
    %698 = vmatpush.msra.mxu0 0.0
    %699 = vmatpush.msra.mxu0 0.0
    %700 = vmatpush.msra.mxu0 0.0
    %701 = vmatpush.msra.mxu0 0.0
    %702 = vmatpush.msra.mxu0 0.0
    %703 = vmatpush.msra.mxu0 0.0
    %704 = vmatpush.msra.mxu0 %v86
    %705 = vmatpush.msra.mxu0 %v85
    %706 = vmatpush.msra.mxu0 %v84
    %707 = vmatpush.msra.mxu0 %v83
    %708 = vmatmul.f32.gmra.mxu0 %v690
    %v709 = vpop.f32.mrf.mxu0
    %v710 = vadd.f32 0.0, %v709
    %711 = vdwg.mxu0
    %v712 = vadd.f32 %v169, %v710
    %v713 = vtanh.pop %v712
    %v714 = vmul.f32 %v713, 0.5
    %v715 = vadd.f32 %v714, 0.5
    %v716 = vmul.f32 %v715, %v627
    %718 = vrot.lane.b32.xlu0 %v713, 32
    %v719 = vpop.permute.xlu0 %718
    %v721 = vmul.f32 %v715, %v719
    %723 = vrot.lane.b32.xlu0 %v721, 32
    %v724 = vpop.permute.xlu0 %723
    %v726 = vadd.f32 %v716, %v724
    %v727 = vtanh.pop %v726
    %729 = vrot.lane.b32.xlu0 %v727, 32
    %v730 = vpop.permute.xlu0 %729
    %v732 = vmul.f32 %v715, %v730
    %734 = vrot.lane.b32.xlu0 %v732, 64
    %v735 = vpop.permute.xlu0 %734
    %737 = vrot.lane.b32.xlu0 %v684, 96
    %v738 = vpop.permute.xlu0 %737
    %v740 = vsel %vm183, %v735, %v738
    %v742 = vsel %vm241, %v740, 0
    %744 = vmatpush.msra.mxu0 0.0
    %745 = vmatpush.msra.mxu0 0.0
    %746 = vmatpush.msra.mxu0 0.0
    %747 = vmatpush.msra.mxu0 0.0
    %748 = vmatpush.msra.mxu0 0.0
    %749 = vmatpush.msra.mxu0 0.0
    %750 = vmatpush.msra.mxu0 0.0
    %751 = vmatpush.msra.mxu0 0.0
    %752 = vmatpush.msra.mxu0 %v95
    %753 = vmatpush.msra.mxu0 %v94
    %754 = vmatpush.msra.mxu0 %v93
    %755 = vmatpush.msra.mxu0 %v92
    %756 = vmatpush.msra.mxu0 %v91
    %757 = vmatpush.msra.mxu0 %v90
    %758 = vmatpush.msra.mxu0 %v89
    %759 = vmatpush.msra.mxu0 %v88
    %760 = vmatmul.f32.gmra.mxu0 %v742
    %v761 = vpop.f32.mrf.mxu0
    %v762 = vadd.f32 %v98, %v761
    %763 = vdwg.mxu0
    %v764 = vtanh.pop %v762
    %v765 = vmul.f32 %v764, 0.5
    %v766 = vadd.f32 %v765, 0.5
    %v767 = vmul.f32 %v766, %v678
    %769 = vrot.lane.b32.xlu0 %v764, 32
    %v770 = vpop.permute.xlu0 %769
    %v772 = vmul.f32 %v766, %v770
    %774 = vrot.lane.b32.xlu0 %v772, 32
    %v775 = vpop.permute.xlu0 %774
    %v777 = vadd.f32 %v767, %v775
    %v778 = vtanh.pop %v777
    %780 = vrot.lane.b32.xlu0 %v778, 32
    %v781 = vpop.permute.xlu0 %780
    %v783 = vmul.f32 %v766, %v781
    %785 = vrot.lane.b32.xlu0 %v783, 64
    %v786 = vpop.permute.xlu0 %785
    %788 = vst.msk [vmem:[%s8 + $0x28] sm:$0xff] %vm183, %v786
    %v789 = vsel %vm183, %v735, 0
    %791 = vmatpush.msra.mxu0 0.0
    %792 = vmatpush.msra.mxu0 0.0
    %793 = vmatpush.msra.mxu0 0.0
    %794 = vmatpush.msra.mxu0 0.0
    %795 = vmatpush.msra.mxu0 0.0
    %796 = vmatpush.msra.mxu0 0.0
    %797 = vmatpush.msra.mxu0 0.0
    %798 = vmatpush.msra.mxu0 0.0
    %799 = vmatpush.msra.mxu0 0.0
    %800 = vmatpush.msra.mxu0 0.0
    %801 = vmatpush.msra.mxu0 0.0
    %802 = vmatpush.msra.mxu0 0.0
    %803 = vmatpush.msra.mxu0 %v86
    %804 = vmatpush.msra.mxu0 %v85
    %805 = vmatpush.msra.mxu0 %v84
    %806 = vmatpush.msra.mxu0 %v83
    %807 = vmatmul.f32.gmra.mxu0 %v789
    %v808 = vpop.f32.mrf.mxu0
    %v809 = vadd.f32 0.0, %v808
    %810 = vdwg.mxu0
    %v811 = vadd.f32 %v172, %v809
    %v812 = vtanh.pop %v811
    %v813 = vmul.f32 %v812, 0.5
    %v814 = vadd.f32 %v813, 0.5
    %v815 = vmul.f32 %v814, %v726
    %817 = vrot.lane.b32.xlu0 %v812, 32
    %v818 = vpop.permute.xlu0 %817
    %v820 = vmul.f32 %v814, %v818
    %822 = vrot.lane.b32.xlu0 %v820, 32
    %v823 = vpop.permute.xlu0 %822
    %v825 = vadd.f32 %v815, %v823
    %v826 = vtanh.pop %v825
    %828 = vrot.lane.b32.xlu0 %v826, 32
    %v829 = vpop.permute.xlu0 %828
    %v831 = vmul.f32 %v814, %v829
    %833 = vrot.lane.b32.xlu0 %v831, 64
    %v834 = vpop.permute.xlu0 %833
    %836 = vrot.lane.b32.xlu0 %v783, 96
    %v837 = vpop.permute.xlu0 %836
    %v839 = vsel %vm183, %v834, %v837
    %v841 = vsel %vm241, %v839, 0
    %843 = vmatpush.msra.mxu0 0.0
    %844 = vmatpush.msra.mxu0 0.0
    %845 = vmatpush.msra.mxu0 0.0
    %846 = vmatpush.msra.mxu0 0.0
    %847 = vmatpush.msra.mxu0 0.0
    %848 = vmatpush.msra.mxu0 0.0
    %849 = vmatpush.msra.mxu0 0.0
    %850 = vmatpush.msra.mxu0 0.0
    %851 = vmatpush.msra.mxu0 %v95
    %852 = vmatpush.msra.mxu0 %v94
    %853 = vmatpush.msra.mxu0 %v93
    %854 = vmatpush.msra.mxu0 %v92
    %855 = vmatpush.msra.mxu0 %v91
    %856 = vmatpush.msra.mxu0 %v90
    %857 = vmatpush.msra.mxu0 %v89
    %858 = vmatpush.msra.mxu0 %v88
    %859 = vmatmul.f32.gmra.mxu0 %v841
    %v860 = vpop.f32.mrf.mxu0
    %v861 = vadd.f32 %v98, %v860
    %862 = vdwg.mxu0
    %v863 = vtanh.pop %v861
    %v864 = vmul.f32 %v863, 0.5
    %v865 = vadd.f32 %v864, 0.5
    %v866 = vmul.f32 %v865, %v777
    %868 = vrot.lane.b32.xlu0 %v863, 32
    %v869 = vpop.permute.xlu0 %868
    %v871 = vmul.f32 %v865, %v869
    %873 = vrot.lane.b32.xlu0 %v871, 32
    %v874 = vpop.permute.xlu0 %873
    %v876 = vadd.f32 %v866, %v874
    %v877 = vtanh.pop %v876
    %879 = vrot.lane.b32.xlu0 %v877, 32
    %v880 = vpop.permute.xlu0 %879
    %v882 = vmul.f32 %v865, %v880
    %884 = vrot.lane.b32.xlu0 %v882, 64
    %v885 = vpop.permute.xlu0 %884
    %887 = vst.msk [vmem:[%s8 + $0x30] sm:$0xff] %vm183, %v885
    %v888 = vsel %vm183, %v834, 0
    %890 = vmatpush.msra.mxu0 0.0
    %891 = vmatpush.msra.mxu0 0.0
    %892 = vmatpush.msra.mxu0 0.0
    %893 = vmatpush.msra.mxu0 0.0
    %894 = vmatpush.msra.mxu0 0.0
    %895 = vmatpush.msra.mxu0 0.0
    %896 = vmatpush.msra.mxu0 0.0
    %897 = vmatpush.msra.mxu0 0.0
    %898 = vmatpush.msra.mxu0 0.0
    %899 = vmatpush.msra.mxu0 0.0
    %900 = vmatpush.msra.mxu0 0.0
    %901 = vmatpush.msra.mxu0 0.0
    %902 = vmatpush.msra.mxu0 %v86
    %903 = vmatpush.msra.mxu0 %v85
    %904 = vmatpush.msra.mxu0 %v84
    %905 = vmatpush.msra.mxu0 %v83
    %906 = vmatmul.f32.gmra.mxu0 %v888
    %v907 = vpop.f32.mrf.mxu0
    %v908 = vadd.f32 0.0, %v907
    %909 = vdwg.mxu0
    %v910 = vadd.f32 %v175, %v908
    %v911 = vtanh.pop %v910
    %v912 = vmul.f32 %v911, 0.5
    %v913 = vadd.f32 %v912, 0.5
    %v914 = vmul.f32 %v913, %v825
    %916 = vrot.lane.b32.xlu0 %v911, 32
    %v917 = vpop.permute.xlu0 %916
    %v919 = vmul.f32 %v913, %v917
    %921 = vrot.lane.b32.xlu0 %v919, 32
    %v922 = vpop.permute.xlu0 %921
    %v924 = vadd.f32 %v914, %v922
    %v925 = vtanh.pop %v924
    %927 = vrot.lane.b32.xlu0 %v925, 32
    %v928 = vpop.permute.xlu0 %927
    %v930 = vmul.f32 %v913, %v928
    %932 = vrot.lane.b32.xlu0 %v930, 64
    %v933 = vpop.permute.xlu0 %932
    %935 = vrot.lane.b32.xlu0 %v882, 96
    %v936 = vpop.permute.xlu0 %935
    %v938 = vsel %vm183, %v933, %v936
    %v940 = vsel %vm241, %v938, 0
    %942 = vmatpush.msra.mxu0 0.0
    %943 = vmatpush.msra.mxu0 0.0
    %944 = vmatpush.msra.mxu0 0.0
    %945 = vmatpush.msra.mxu0 0.0
    %946 = vmatpush.msra.mxu0 0.0
    %947 = vmatpush.msra.mxu0 0.0
    %948 = vmatpush.msra.mxu0 0.0
    %949 = vmatpush.msra.mxu0 0.0
    %950 = vmatpush.msra.mxu0 %v95
    %951 = vmatpush.msra.mxu0 %v94
    %952 = vmatpush.msra.mxu0 %v93
    %953 = vmatpush.msra.mxu0 %v92
    %954 = vmatpush.msra.mxu0 %v91
    %955 = vmatpush.msra.mxu0 %v90
    %956 = vmatpush.msra.mxu0 %v89
    %957 = vmatpush.msra.mxu0 %v88
    %958 = vmatmul.f32.gmra.mxu0 %v940
    %v959 = vpop.f32.mrf.mxu0
    %v960 = vadd.f32 %v98, %v959
    %961 = vdwg.mxu0
    %v962 = vtanh.pop %v960
    %v963 = vmul.f32 %v962, 0.5
    %v964 = vadd.f32 %v963, 0.5
    %v965 = vmul.f32 %v964, %v876
    %967 = vrot.lane.b32.xlu0 %v962, 32
    %v968 = vpop.permute.xlu0 %967
    %v970 = vmul.f32 %v964, %v968
    %972 = vrot.lane.b32.xlu0 %v970, 32
    %v973 = vpop.permute.xlu0 %972
    %v975 = vadd.f32 %v965, %v973
    %v976 = vtanh.pop %v975
    %978 = vrot.lane.b32.xlu0 %v976, 32
    %v979 = vpop.permute.xlu0 %978
    %v981 = vmul.f32 %v964, %v979
    %983 = vrot.lane.b32.xlu0 %v981, 64
    %v984 = vpop.permute.xlu0 %983
    %986 = vst.msk [vmem:[%s8 + $0x38] sm:$0xff] %vm183, %v984
    %987 = vst.msk [vmem:[#allocation8] sm:$0xff] %vm183, %v933
    %989 = vrot.lane.b32.xlu0 %v924, 96
    %v990 = vpop.permute.xlu0 %989
    %992 = vst.msk [vmem:[#allocation9] sm:$0xff] %vm183, %v990
    %s993 = scalar_lea.vmem [#allocation8], 8
    %994 = vst.msk [vmem:[%s993] sm:$0xff] %vm183, %v984
    %996 = vrot.lane.b32.xlu0 %v975, 96
    %v997 = vpop.permute.xlu0 %996
    %s999 = scalar_lea.vmem [#allocation9], 8
    %1000 = vst.msk [vmem:[%s999] sm:$0xff] %vm183, %v997
    // Predicated region
    $region46: #{tpu_custom_call.1} parent=1 // pred_check
      _
    $region47: #{tpu_custom_call.1} parent=1 // pred_check_branch
      %1002 = sbr.rel (0) target = $region49
    $region48: #{tpu_custom_call.1} parent=1 // pred_region
      _
    $region49: #{tpu_custom_call.1} parent=1 // pred_fallthru
      _
    // Predicated region
    $region50: #{tpu_custom_call.1} parent=1 // pred_check
      _
    $region51: #{tpu_custom_call.1} parent=1 // pred_check_branch
      %1004 = sbr.rel (0) target = $region53
    $region52: #{tpu_custom_call.1} parent=1 // pred_region
      %1006 = vsyncadd [#allocation4], 0
      %s1007 = sshll.u32 [#allocation8], 4
      %s1008 = int_to_ptr.vmem [resolvable:$true] %s1007
      %s1009 = sshll.u32 %s9, 4
      %s1010 = int_to_ptr.hbm [resolvable:$true] %s1009
      %1015 = dma.vmem_to_hbm [thread:$0]  %s1008, 256, %s1010, [#allocation4], 128, 128, 8
    $region53: #{tpu_custom_call.1} parent=1 // pred_fallthru
      _
    // Predicated region
    $region54: #{tpu_custom_call.1} parent=1 // pred_check
      _
    $region55: #{tpu_custom_call.1} parent=1 // pred_check_branch
      %1017 = sbr.rel (0) target = $region57
    $region56: #{tpu_custom_call.1} parent=1 // pred_region
      %1019 = vsyncadd [#allocation10], 0
      %s1020 = sshll.u32 [#allocation9], 4
      %s1021 = int_to_ptr.vmem [resolvable:$true] %s1020
      %s1022 = sshll.u32 %s10, 4
      %s1023 = int_to_ptr.hbm [resolvable:$true] %s1022
      %1028 = dma.vmem_to_hbm [thread:$0]  %s1021, 256, %s1023, [#allocation10], 128, 128, 8
    $region57: #{tpu_custom_call.1} parent=1 // pred_fallthru
      _
    // Predicated region
    $region58: #{tpu_custom_call.1} parent=1 // pred_check
      _
    $region59: #{tpu_custom_call.1} parent=1 // pred_check_branch
      %1030 = sbr.rel (0) target = $region61
    $region60: #{tpu_custom_call.1} parent=1 // pred_region
      _
    $region61: #{tpu_custom_call.1} parent=1 // pred_fallthru
      _
    // Predicated region
    $region62: #{tpu_custom_call.1} parent=1 // pred_check
      _
    $region63: #{tpu_custom_call.1} parent=1 // pred_check_branch
      %1032 = sbr.rel (0) target = $region65
    $region64: #{tpu_custom_call.1} parent=1 // pred_region
      %1034 = dma.done [#allocation4], 256
    $region65: #{tpu_custom_call.1} parent=1 // pred_fallthru
      _
    // Predicated region
    $region66: #{tpu_custom_call.1} parent=1 // pred_check
      _
    $region67: #{tpu_custom_call.1} parent=1 // pred_check_branch
      %1036 = sbr.rel (0) target = $region69
    $region68: #{tpu_custom_call.1} parent=1 // pred_region
      %1038 = dma.done [#allocation10], 256
    $region69: #{tpu_custom_call.1} parent=1 // pred_fallthru
      _
    %1039 = vsyncpa [#allocation3], 1
    %1040 = vsyncpa [#allocation6], 1
    %1041 = vsyncpa [#allocation4], 1
    %1042 = vsyncpa [#allocation10], 1

</llo_original>
